<compile_context>
chip_gen: v6e
topology: v6e:2x2x1
jax: 0.10.0
libtpu: 0.0.40
codegen_flags: <defaults>
</compile_context>

<pallas_src>
import functools

import jax
import jax.numpy as jnp
from jax.experimental import pallas as pl
from jax.experimental.pallas import tpu as pltpu


def _value_net_kernel(x_ref,
                      w1_ref, b1_ref, w2_ref, b2_ref, w3_ref, b3_ref,
                      w4_ref, b4_ref, w5_ref, b5_ref, w6_ref, b6_ref,
                      o_ref):
    # x_ref: (TB, D) f32 tile of the batch.
    h = x_ref[...].astype(jnp.bfloat16)                       # (TB, D) bf16

    def dense_relu(h_bf16, w_ref, b_ref):
        # bf16 x bf16 -> f32 accumulate on the MXU, bias + ReLU in f32.
        z = jnp.dot(h_bf16, w_ref[...],
                    preferred_element_type=jnp.float32) + b_ref[...]
        return jnp.maximum(z, 0.0).astype(jnp.bfloat16)

    h = dense_relu(h, w1_ref, b1_ref)                         # (TB, 64)
    h = dense_relu(h, w2_ref, b2_ref)
    h = dense_relu(h, w3_ref, b3_ref)
    h = dense_relu(h, w4_ref, b4_ref)
    h = dense_relu(h, w5_ref, b5_ref)

    # fc6: (TB, 64) @ (64, 1) + b6  -- no activation (value head).
    v = jnp.dot(h, w6_ref[...],
                preferred_element_type=jnp.float32) + b6_ref[...]   # (TB, 1)
    o_ref[...] = v.astype(o_ref.dtype)


def deep_ppo_value_forward(s, params, *, tb=128):
    """s: (N, state_dim) float32.  Returns (N, 1) float32 values."""
    w1, b1, w2, b2, w3, b3, w4, b4, w5, b5, w6, b6 = params
    N, D = s.shape

    # Pad the batch up to a multiple of the tile size TB (TB rows per grid
    # step -> matmul M dimension = TB, amortizing the ~0.35 us/step overhead).
    n_pad = ((N + tb - 1) // tb) * tb
    x = s.astype(jnp.float32)
    if n_pad != N:
        x = jnp.pad(x, ((0, n_pad - N), (0, 0)))
    n_tiles = n_pad // tb

    # Matmul weights in bf16 (native MXU path); biases stay f32.
    wb = lambda w: w.astype(jnp.bfloat16)
    full = lambda a: pl.BlockSpec(a.shape, lambda i: (0,) * a.ndim)

    out = pl.pallas_call(
        _value_net_kernel,
        out_shape=jax.ShapeDtypeStruct((n_pad, 1), jnp.float32),
        grid_spec=pltpu.PrefetchScalarGridSpec(
            num_scalar_prefetch=0,
            grid=(n_tiles,),
            in_specs=[
                pl.BlockSpec((tb, D), lambda i: (i, 0)),        # x tile
                full(w1), full(b1),
                full(w2), full(b2),
                full(w3), full(b3),
                full(w4), full(b4),
                full(w5), full(b5),
                full(w6), full(b6),
            ],
            out_specs=pl.BlockSpec((tb, 1), lambda i: (i, 0)),
        ),
        compiler_params=pltpu.CompilerParams(
            dimension_semantics=("parallel",)),
    )(x,
      wb(w1), b1, wb(w2), b2, wb(w3), b3,
      wb(w4), b4, wb(w5), b5, wb(w6), b6)

    return out[:N]


def init_params(key, state_dim):
    """Deterministic init matching the PyTorch module's layer shapes.

    Kernel layout is (in, out) per weight (PyTorch stores (out, in));
    biases are stored as (1, out) for 2-D VMEM tiles.
    """
    dims = [state_dim, 64, 64, 64, 64, 64, 1]
    keys = jax.random.split(key, 12)
    params = []
    for li in range(6):
        fan_in = dims[li]
        bound = 1.0 / (fan_in ** 0.5)
        w = jax.random.uniform(keys[2 * li], (dims[li], dims[li + 1]),
                               jnp.float32, -bound, bound)
        b = jax.random.uniform(keys[2 * li + 1], (1, dims[li + 1]),
                               jnp.float32, -bound, bound)
        params += [w, b]
    return tuple(params)


def _reference_forward(s, params):
    """Pure-JAX reference using the same bf16-operand / f32-accumulate math."""
    w1, b1, w2, b2, w3, b3, w4, b4, w5, b5, w6, b6 = params

    def layer(h, w, b, relu=True):
        z = jnp.dot(h.astype(jnp.bfloat16), w.astype(jnp.bfloat16),
                    preferred_element_type=jnp.float32) + b
        if relu:
            z = jnp.maximum(z, 0.0)
        return z

    h = layer(s.astype(jnp.float32), w1, b1)
    h = layer(h, w2, b2)
    h = layer(h, w3, b3)
    h = layer(h, w4, b4)
    h = layer(h, w5, b5)
    return layer(h, w6, b6, relu=False)                       # (N, 1)


if __name__ == "__main__":
    state_dim = 16
    N = 256                      # 2 tiles of TB=128 -> both v7x cores get work

    key = jax.random.PRNGKey(0)
    pkey, xkey = jax.random.split(key)
    params = init_params(pkey, state_dim)
    s = jax.random.normal(xkey, (N, state_dim), jnp.float32)

    out = deep_ppo_value_forward(s, params, tb=128)
    out = jax.block_until_ready(out)

    ref = _reference_forward(s, params)
    assert out.shape == (N, 1), out.shape
    assert jnp.allclose(out, ref, atol=2e-3, rtol=2e-3), "mismatch vs reference"

    print("KERNEL_OK")
</pallas_src>

<mosaic_0001>
module attributes {stable_mosaic.version = 11 : i64} {
  func.func @_value_net_kernel(%arg0: i32, %arg1: memref<128x16xf32, #tpu.memory_space<vmem>>, %arg2: memref<16x64xbf16, #tpu.memory_space<vmem>>, %arg3: memref<1x64xf32, #tpu.memory_space<vmem>>, %arg4: memref<64x64xbf16, #tpu.memory_space<vmem>>, %arg5: memref<1x64xf32, #tpu.memory_space<vmem>>, %arg6: memref<64x64xbf16, #tpu.memory_space<vmem>>, %arg7: memref<1x64xf32, #tpu.memory_space<vmem>>, %arg8: memref<64x64xbf16, #tpu.memory_space<vmem>>, %arg9: memref<1x64xf32, #tpu.memory_space<vmem>>, %arg10: memref<64x64xbf16, #tpu.memory_space<vmem>>, %arg11: memref<1x64xf32, #tpu.memory_space<vmem>>, %arg12: memref<64x1xbf16, #tpu.memory_space<vmem>>, %arg13: memref<1x1xf32, #tpu.memory_space<vmem>>, %arg14: memref<128x1xf32, #tpu.memory_space<vmem>>) attributes {dimension_semantics = [#tpu.dimension_semantics<parallel>], iteration_bounds = array<i64: 2>, scalar_prefetch = 0 : i64, scratch_operands = 0 : i64, tpu.core_type = #tpu.core_type<tc>, window_params = [{transform_indices = @transform_0, window_bounds = array<i64: 128, 16>}, {pipeline_mode = #tpu.pipeline_mode<synchronous>, transform_indices = @transform_1, window_bounds = array<i64: 16, 64>}, {pipeline_mode = #tpu.pipeline_mode<synchronous>, transform_indices = @transform_2, window_bounds = array<i64: 1, 64>}, {pipeline_mode = #tpu.pipeline_mode<synchronous>, transform_indices = @transform_3, window_bounds = array<i64: 64, 64>}, {pipeline_mode = #tpu.pipeline_mode<synchronous>, transform_indices = @transform_4, window_bounds = array<i64: 1, 64>}, {pipeline_mode = #tpu.pipeline_mode<synchronous>, transform_indices = @transform_5, window_bounds = array<i64: 64, 64>}, {pipeline_mode = #tpu.pipeline_mode<synchronous>, transform_indices = @transform_6, window_bounds = array<i64: 1, 64>}, {pipeline_mode = #tpu.pipeline_mode<synchronous>, transform_indices = @transform_7, window_bounds = array<i64: 64, 64>}, {pipeline_mode = #tpu.pipeline_mode<synchronous>, transform_indices = @transform_8, window_bounds = array<i64: 1, 64>}, {pipeline_mode = #tpu.pipeline_mode<synchronous>, transform_indices = @transform_9, window_bounds = array<i64: 64, 64>}, {pipeline_mode = #tpu.pipeline_mode<synchronous>, transform_indices = @transform_10, window_bounds = array<i64: 1, 64>}, {pipeline_mode = #tpu.pipeline_mode<synchronous>, transform_indices = @transform_11, window_bounds = array<i64: 64, 1>}, {pipeline_mode = #tpu.pipeline_mode<synchronous>, transform_indices = @transform_12, window_bounds = array<i64: 1, 1>}, {transform_indices = @transform_13, window_bounds = array<i64: 128, 1>}]} {
    %c0 = arith.constant 0 : index
    %c0_0 = arith.constant 0 : index
    %0 = vector.load %arg1[%c0, %c0_0] : memref<128x16xf32, #tpu.memory_space<vmem>>, vector<128x16xf32>
    %1 = arith.truncf %0 : vector<128x16xf32> to vector<128x16xbf16>
    %c0_1 = arith.constant 0 : index
    %c0_2 = arith.constant 0 : index
    %2 = vector.load %arg2[%c0_1, %c0_2] : memref<16x64xbf16, #tpu.memory_space<vmem>>, vector<16x64xbf16>
    %cst = arith.constant dense<0.000000e+00> : vector<128x64xf32>
    %3 = tpu.matmul %1, %2, %cst {dimension_numbers = #tpu.dot_dimension_numbers<[1], [0], [0], [1], [0, 0, 1, 1], [], []>} : vector<128x16xbf16>, vector<16x64xbf16>, vector<128x64xf32> -> vector<128x64xf32>
    %c0_3 = arith.constant 0 : index
    %c0_4 = arith.constant 0 : index
    %4 = vector.load %arg3[%c0_3, %c0_4] : memref<1x64xf32, #tpu.memory_space<vmem>>, vector<1x64xf32>
    %5 = vector.broadcast %4 : vector<1x64xf32> to vector<128x64xf32>
    %6 = arith.addf %3, %5 : vector<128x64xf32>
    %cst_5 = arith.constant 0.000000e+00 : f32
    %7 = vector.broadcast %cst_5 : f32 to vector<128x64xf32>
    %8 = arith.maximumf %6, %7 : vector<128x64xf32>
    %9 = arith.truncf %8 : vector<128x64xf32> to vector<128x64xbf16>
    %c0_6 = arith.constant 0 : index
    %c0_7 = arith.constant 0 : index
    %10 = vector.load %arg4[%c0_6, %c0_7] : memref<64x64xbf16, #tpu.memory_space<vmem>>, vector<64x64xbf16>
    %cst_8 = arith.constant dense<0.000000e+00> : vector<128x64xf32>
    %11 = tpu.matmul %9, %10, %cst_8 {dimension_numbers = #tpu.dot_dimension_numbers<[1], [0], [0], [1], [0, 0, 1, 1], [], []>} : vector<128x64xbf16>, vector<64x64xbf16>, vector<128x64xf32> -> vector<128x64xf32>
    %c0_9 = arith.constant 0 : index
    %c0_10 = arith.constant 0 : index
    %12 = vector.load %arg5[%c0_9, %c0_10] : memref<1x64xf32, #tpu.memory_space<vmem>>, vector<1x64xf32>
    %13 = vector.broadcast %12 : vector<1x64xf32> to vector<128x64xf32>
    %14 = arith.addf %11, %13 : vector<128x64xf32>
    %cst_11 = arith.constant 0.000000e+00 : f32
    %15 = vector.broadcast %cst_11 : f32 to vector<128x64xf32>
    %16 = arith.maximumf %14, %15 : vector<128x64xf32>
    %17 = arith.truncf %16 : vector<128x64xf32> to vector<128x64xbf16>
    %c0_12 = arith.constant 0 : index
    %c0_13 = arith.constant 0 : index
    %18 = vector.load %arg6[%c0_12, %c0_13] : memref<64x64xbf16, #tpu.memory_space<vmem>>, vector<64x64xbf16>
    %cst_14 = arith.constant dense<0.000000e+00> : vector<128x64xf32>
    %19 = tpu.matmul %17, %18, %cst_14 {dimension_numbers = #tpu.dot_dimension_numbers<[1], [0], [0], [1], [0, 0, 1, 1], [], []>} : vector<128x64xbf16>, vector<64x64xbf16>, vector<128x64xf32> -> vector<128x64xf32>
    %c0_15 = arith.constant 0 : index
    %c0_16 = arith.constant 0 : index
    %20 = vector.load %arg7[%c0_15, %c0_16] : memref<1x64xf32, #tpu.memory_space<vmem>>, vector<1x64xf32>
    %21 = vector.broadcast %20 : vector<1x64xf32> to vector<128x64xf32>
    %22 = arith.addf %19, %21 : vector<128x64xf32>
    %cst_17 = arith.constant 0.000000e+00 : f32
    %23 = vector.broadcast %cst_17 : f32 to vector<128x64xf32>
    %24 = arith.maximumf %22, %23 : vector<128x64xf32>
    %25 = arith.truncf %24 : vector<128x64xf32> to vector<128x64xbf16>
    %c0_18 = arith.constant 0 : index
    %c0_19 = arith.constant 0 : index
    %26 = vector.load %arg8[%c0_18, %c0_19] : memref<64x64xbf16, #tpu.memory_space<vmem>>, vector<64x64xbf16>
    %cst_20 = arith.constant dense<0.000000e+00> : vector<128x64xf32>
    %27 = tpu.matmul %25, %26, %cst_20 {dimension_numbers = #tpu.dot_dimension_numbers<[1], [0], [0], [1], [0, 0, 1, 1], [], []>} : vector<128x64xbf16>, vector<64x64xbf16>, vector<128x64xf32> -> vector<128x64xf32>
    %c0_21 = arith.constant 0 : index
    %c0_22 = arith.constant 0 : index
    %28 = vector.load %arg9[%c0_21, %c0_22] : memref<1x64xf32, #tpu.memory_space<vmem>>, vector<1x64xf32>
    %29 = vector.broadcast %28 : vector<1x64xf32> to vector<128x64xf32>
    %30 = arith.addf %27, %29 : vector<128x64xf32>
    %cst_23 = arith.constant 0.000000e+00 : f32
    %31 = vector.broadcast %cst_23 : f32 to vector<128x64xf32>
    %32 = arith.maximumf %30, %31 : vector<128x64xf32>
    %33 = arith.truncf %32 : vector<128x64xf32> to vector<128x64xbf16>
    %c0_24 = arith.constant 0 : index
    %c0_25 = arith.constant 0 : index
    %34 = vector.load %arg10[%c0_24, %c0_25] : memref<64x64xbf16, #tpu.memory_space<vmem>>, vector<64x64xbf16>
    %cst_26 = arith.constant dense<0.000000e+00> : vector<128x64xf32>
    %35 = tpu.matmul %33, %34, %cst_26 {dimension_numbers = #tpu.dot_dimension_numbers<[1], [0], [0], [1], [0, 0, 1, 1], [], []>} : vector<128x64xbf16>, vector<64x64xbf16>, vector<128x64xf32> -> vector<128x64xf32>
    %c0_27 = arith.constant 0 : index
    %c0_28 = arith.constant 0 : index
    %36 = vector.load %arg11[%c0_27, %c0_28] : memref<1x64xf32, #tpu.memory_space<vmem>>, vector<1x64xf32>
    %37 = vector.broadcast %36 : vector<1x64xf32> to vector<128x64xf32>
    %38 = arith.addf %35, %37 : vector<128x64xf32>
    %cst_29 = arith.constant 0.000000e+00 : f32
    %39 = vector.broadcast %cst_29 : f32 to vector<128x64xf32>
    %40 = arith.maximumf %38, %39 : vector<128x64xf32>
    %41 = arith.truncf %40 : vector<128x64xf32> to vector<128x64xbf16>
    %c0_30 = arith.constant 0 : index
    %c0_31 = arith.constant 0 : index
    %42 = vector.load %arg12[%c0_30, %c0_31] : memref<64x1xbf16, #tpu.memory_space<vmem>>, vector<64x1xbf16>
    %cst_32 = arith.constant dense<0.000000e+00> : vector<128x1xf32>
    %43 = tpu.matmul %41, %42, %cst_32 {dimension_numbers = #tpu.dot_dimension_numbers<[1], [0], [0], [1], [0, 0, 1, 1], [], []>} : vector<128x64xbf16>, vector<64x1xbf16>, vector<128x1xf32> -> vector<128x1xf32>
    %c0_33 = arith.constant 0 : index
    %c0_34 = arith.constant 0 : index
    %44 = vector.load %arg13[%c0_33, %c0_34] : memref<1x1xf32, #tpu.memory_space<vmem>>, vector<1x1xf32>
    %45 = vector.broadcast %44 : vector<1x1xf32> to vector<128x1xf32>
    %46 = arith.addf %43, %45 : vector<128x1xf32>
    %c0_35 = arith.constant 0 : index
    %c0_36 = arith.constant 0 : index
    %47 = vector.load %arg14[%c0_35, %c0_36] : memref<128x1xf32, #tpu.memory_space<vmem>>, vector<128x1xf32>
    tpu.vector_store %arg14[%c0_35, %c0_36], %46 {strides = array<i32>} : memref<128x1xf32, #tpu.memory_space<vmem>>, vector<128x1xf32>,
    return
  }
  func.func @transform_0(%arg0: i32) -> (i32, i32) {
    %c0_i32 = arith.constant 0 : i32
    %c0_i32_0 = arith.constant 0 : i32
    return %arg0, %c0_i32 : i32, i32
  }
  func.func @transform_1(%arg0: i32) -> (i32, i32) {
    %c0_i32 = arith.constant 0 : i32
    %c0_i32_0 = arith.constant 0 : i32
    %c0_i32_1 = arith.constant 0 : i32
    return %c0_i32, %c0_i32_0 : i32, i32
  }
  func.func @transform_2(%arg0: i32) -> (i32, i32) {
    %c0_i32 = arith.constant 0 : i32
    %c0_i32_0 = arith.constant 0 : i32
    %c0_i32_1 = arith.constant 0 : i32
    return %c0_i32, %c0_i32_0 : i32, i32
  }
  func.func @transform_3(%arg0: i32) -> (i32, i32) {
    %c0_i32 = arith.constant 0 : i32
    %c0_i32_0 = arith.constant 0 : i32
    %c0_i32_1 = arith.constant 0 : i32
    return %c0_i32, %c0_i32_0 : i32, i32
  }
  func.func @transform_4(%arg0: i32) -> (i32, i32) {
    %c0_i32 = arith.constant 0 : i32
    %c0_i32_0 = arith.constant 0 : i32
    %c0_i32_1 = arith.constant 0 : i32
    return %c0_i32, %c0_i32_0 : i32, i32
  }
  func.func @transform_5(%arg0: i32) -> (i32, i32) {
    %c0_i32 = arith.constant 0 : i32
    %c0_i32_0 = arith.constant 0 : i32
    %c0_i32_1 = arith.constant 0 : i32
    return %c0_i32, %c0_i32_0 : i32, i32
  }
  func.func @transform_6(%arg0: i32) -> (i32, i32) {
    %c0_i32 = arith.constant 0 : i32
    %c0_i32_0 = arith.constant 0 : i32
    %c0_i32_1 = arith.constant 0 : i32
    return %c0_i32, %c0_i32_0 : i32, i32
  }
  func.func @transform_7(%arg0: i32) -> (i32, i32) {
    %c0_i32 = arith.constant 0 : i32
    %c0_i32_0 = arith.constant 0 : i32
    %c0_i32_1 = arith.constant 0 : i32
    return %c0_i32, %c0_i32_0 : i32, i32
  }
  func.func @transform_8(%arg0: i32) -> (i32, i32) {
    %c0_i32 = arith.constant 0 : i32
    %c0_i32_0 = arith.constant 0 : i32
    %c0_i32_1 = arith.constant 0 : i32
    return %c0_i32, %c0_i32_0 : i32, i32
  }
  func.func @transform_9(%arg0: i32) -> (i32, i32) {
    %c0_i32 = arith.constant 0 : i32
    %c0_i32_0 = arith.constant 0 : i32
    %c0_i32_1 = arith.constant 0 : i32
    return %c0_i32, %c0_i32_0 : i32, i32
  }
  func.func @transform_10(%arg0: i32) -> (i32, i32) {
    %c0_i32 = arith.constant 0 : i32
    %c0_i32_0 = arith.constant 0 : i32
    %c0_i32_1 = arith.constant 0 : i32
    return %c0_i32, %c0_i32_0 : i32, i32
  }
  func.func @transform_11(%arg0: i32) -> (i32, i32) {
    %c0_i32 = arith.constant 0 : i32
    %c0_i32_0 = arith.constant 0 : i32
    %c0_i32_1 = arith.constant 0 : i32
    return %c0_i32, %c0_i32_0 : i32, i32
  }
  func.func @transform_12(%arg0: i32) -> (i32, i32) {
    %c0_i32 = arith.constant 0 : i32
    %c0_i32_0 = arith.constant 0 : i32
    %c0_i32_1 = arith.constant 0 : i32
    return %c0_i32, %c0_i32_0 : i32, i32
  }
  func.func @transform_13(%arg0: i32) -> (i32, i32) {
    %c0_i32 = arith.constant 0 : i32
    %c0_i32_0 = arith.constant 0 : i32
    return %arg0, %c0_i32 : i32, i32
  }
}

</mosaic_0001>

<llo_original>
// kernel: tpu_custom_call.1
$region0: #{tpu_custom_call.1}
  #allocation0 [shape = 'u32[]', space=smem, size = 0x4, offset = 0x4, fixed_abs, tag = 'smem constant byte address 0x4 - core index']
  #allocation1 [shape = 'u32[144,128]{1,0:T(1,128)}', space=vmem, size = 0x12000, scoped, tag = 'internal scratch']
  #allocation2 [shape = 'f32[1,1]{1,0:T(1,128)S(1)}', space=vmem, size = 0x200, scoped, tag = 'scoped memory for tpu_custom_call.1']
  %s0 = inlined_call_operand.vmem [shape: f32[256,16], index: 0, kind: input, shape index: {}]
  %s1 = inlined_call_operand.vmem [shape: bf16[16,64], index: 1, kind: input, shape index: {}]
  %s2 = inlined_call_operand.vmem [shape: f32[1,64], index: 2, kind: input, shape index: {}]
  %s3 = inlined_call_operand.vmem [shape: bf16[64,64], index: 3, kind: input, shape index: {}]
  %s4 = inlined_call_operand.vmem [shape: f32[1,64], index: 4, kind: input, shape index: {}]
  %s5 = inlined_call_operand.vmem [shape: bf16[64,64], index: 5, kind: input, shape index: {}]
  %s6 = inlined_call_operand.vmem [shape: f32[1,64], index: 6, kind: input, shape index: {}]
  %s7 = inlined_call_operand.vmem [shape: bf16[64,64], index: 7, kind: input, shape index: {}]
  %s8 = inlined_call_operand.vmem [shape: f32[1,64], index: 8, kind: input, shape index: {}]
  %s9 = inlined_call_operand.vmem [shape: bf16[64,64], index: 9, kind: input, shape index: {}]
  %s10 = inlined_call_operand.vmem [shape: f32[1,64], index: 10, kind: input, shape index: {}]
  %s11 = inlined_call_operand.vmem [shape: bf16[64,1], index: 11, kind: input, shape index: {}]
  %s12 = inlined_call_operand.<no memory space> [shape: f32[1,1], index: 12, kind: input, shape index: {}]
  %s13 = inlined_call_operand.vmem [shape: f32[256,1], index: 13, kind: output, shape index: {}]
  %s14 = sld [smem:[#allocation0]]
  $region85: #{tpu_custom_call.1} parent=0
    _
  %s16 = ssub.s32 1, %s14
  %s17 = scalar_select 0, %s16, %s14
  %v18 = vstv %s12
  %19 = vst [vmem:[#allocation2] sm:$0x1] %v18
  loop: start=0, step=1, limit=4
  $region2: #{tpu_custom_call.1} parent=0 // loop_pre_header
    _
  $region3: #{tpu_custom_call.1} parent=0 // loop_header
    %s21 = sphi 0, %s25
    %p22 = scmp.ge.s32.totalorder %s21, 4
    %s31 = sphi 0, %s33
    %s34 = sphi 0, %s31
    %s35 = sphi 0, %s34
    %s51 = sphi 0, %s35
    %s55 = sphi 0, %s55
    %s57 = sphi 0, %s55
    %s58 = sphi 0, %s57
    %s72 = sphi 0, %s58
    %s76 = sphi 0, %s76
    %s78 = sphi 0, %s76
    %s79 = sphi 0, %s78
    %s93 = sphi 0, %s79
    %s97 = sphi 0, %s97
    %s99 = sphi 0, %s97
    %s100 = sphi 0, %s99
    %s114 = sphi 0, %s100
    %s118 = sphi 0, %s118
    %s120 = sphi 0, %s118
    %s121 = sphi 0, %s120
    %s135 = sphi 0, %s121
    %s139 = sphi 0, %s139
    %s141 = sphi 0, %s139
    %s142 = sphi 0, %s141
    %s156 = sphi 0, %s142
    %s160 = sphi 0, %s160
    %s162 = sphi 0, %s160
    %s163 = sphi 0, %s162
    %s177 = sphi 0, %s163
    %s181 = sphi 0, %s181
    %s183 = sphi 0, %s181
    %s184 = sphi 0, %s183
    %s198 = sphi 0, %s184
    %s202 = sphi 0, %s202
    %s204 = sphi 0, %s202
    %s205 = sphi 0, %s204
    %s219 = sphi 0, %s205
    %s223 = sphi 0, %s223
    %s225 = sphi 0, %s223
    %s226 = sphi 0, %s225
    %s240 = sphi 0, %s226
    %s244 = sphi 0, %s244
    %s246 = sphi 0, %s244
    %s247 = sphi 0, %s246
    %s261 = sphi 0, %s247
    %s265 = sphi 0, %s265
    %s267 = sphi 0, %s265
    %s268 = sphi 0, %s267
    %s282 = sphi 0, %s268
    %s286 = sphi 0, %s286
    %s288 = sphi 0, %s286
    %s289 = sphi 0, %s288
    %s303 = sphi 0, %s289
    %s309 = sphi 0, %s311
    %s312 = sphi 0, %s309
    %s313 = sphi 0, %s312
    %s329 = sphi 0, %s313
  $region4: #{tpu_custom_call.1} parent=0 // loop_header_branch
    %24 = sbr.rel (%p22) target = $region8
  $region5: #{tpu_custom_call.1} parent=0 // loop_body
    %s26 = ssub.s32 %s21, 1
    %s27 = ssub.s32 %s21, 2
    %s28 = sadd.s32 %s21, 1
    %s29 = ssub.s32 %s21, %s28
    %p30 = scmp.eq.s32.totalorder %s29, 0
    %s32 = sadd.s32 %s31, 1
    %s33 = scalar_select %p30, %s31, %s32
    %p36 = pneg %p30
    %p37 = scmp.eq.s32.totalorder %s21, 1
    %p38 = por %p36, %p37
    %p39 = scmp.ne.s32.totalorder %s31, %s34
    %p40 = scmp.eq.s32.totalorder %s21, 0
    %p41 = por %p39, %p40
    %p42 = scmp.ne.s32.totalorder %s31, %s34
    %p43 = scmp.eq.s32.totalorder %s26, 1
    %p44 = por %p42, %p43
    %p45 = scmp.ne.s32.totalorder %s34, %s35
    %p46 = scmp.eq.s32.totalorder %s26, 0
    %p47 = por %p45, %p46
    %p48 = scmp.ne.s32.totalorder %s34, %s35
    %p49 = scmp.eq.s32.totalorder %s27, 1
    %p50 = por %p48, %p49
    %p52 = scmp.ne.s32.totalorder %s35, %s51
    %p53 = scmp.eq.s32.totalorder %s27, 0
    %p54 = por %p52, %p53
    %s56 = sadd.s32 %s55, 1
    %p59 = scmp.eq.s32.totalorder %s21, 1
    %p60 = scmp.ne.s32.totalorder %s55, %s57
    %p61 = scmp.eq.s32.totalorder %s21, 0
    %p62 = por %p60, %p61
    %p63 = scmp.ne.s32.totalorder %s55, %s57
    %p64 = scmp.eq.s32.totalorder %s26, 1
    %p65 = por %p63, %p64
    %p66 = scmp.ne.s32.totalorder %s57, %s58
    %p67 = scmp.eq.s32.totalorder %s26, 0
    %p68 = por %p66, %p67
    %p69 = scmp.ne.s32.totalorder %s57, %s58
    %p70 = scmp.eq.s32.totalorder %s27, 1
    %p71 = por %p69, %p70
    %p73 = scmp.ne.s32.totalorder %s58, %s72
    %p74 = scmp.eq.s32.totalorder %s27, 0
    %p75 = por %p73, %p74
    %s77 = sadd.s32 %s76, 1
    %p80 = scmp.eq.s32.totalorder %s21, 1
    %p81 = scmp.ne.s32.totalorder %s76, %s78
    %p82 = scmp.eq.s32.totalorder %s21, 0
    %p83 = por %p81, %p82
    %p84 = scmp.ne.s32.totalorder %s76, %s78
    %p85 = scmp.eq.s32.totalorder %s26, 1
    %p86 = por %p84, %p85
    %p87 = scmp.ne.s32.totalorder %s78, %s79
    %p88 = scmp.eq.s32.totalorder %s26, 0
    %p89 = por %p87, %p88
    %p90 = scmp.ne.s32.totalorder %s78, %s79
    %p91 = scmp.eq.s32.totalorder %s27, 1
    %p92 = por %p90, %p91
    %p94 = scmp.ne.s32.totalorder %s79, %s93
    %p95 = scmp.eq.s32.totalorder %s27, 0
    %p96 = por %p94, %p95
    %s98 = sadd.s32 %s97, 1
    %p101 = scmp.eq.s32.totalorder %s21, 1
    %p102 = scmp.ne.s32.totalorder %s97, %s99
    %p103 = scmp.eq.s32.totalorder %s21, 0
    %p104 = por %p102, %p103
    %p105 = scmp.ne.s32.totalorder %s97, %s99
    %p106 = scmp.eq.s32.totalorder %s26, 1
    %p107 = por %p105, %p106
    %p108 = scmp.ne.s32.totalorder %s99, %s100
    %p109 = scmp.eq.s32.totalorder %s26, 0
    %p110 = por %p108, %p109
    %p111 = scmp.ne.s32.totalorder %s99, %s100
    %p112 = scmp.eq.s32.totalorder %s27, 1
    %p113 = por %p111, %p112
    %p115 = scmp.ne.s32.totalorder %s100, %s114
    %p116 = scmp.eq.s32.totalorder %s27, 0
    %p117 = por %p115, %p116
    %s119 = sadd.s32 %s118, 1
    %p122 = scmp.eq.s32.totalorder %s21, 1
    %p123 = scmp.ne.s32.totalorder %s118, %s120
    %p124 = scmp.eq.s32.totalorder %s21, 0
    %p125 = por %p123, %p124
    %p126 = scmp.ne.s32.totalorder %s118, %s120
    %p127 = scmp.eq.s32.totalorder %s26, 1
    %p128 = por %p126, %p127
    %p129 = scmp.ne.s32.totalorder %s120, %s121
    %p130 = scmp.eq.s32.totalorder %s26, 0
    %p131 = por %p129, %p130
    %p132 = scmp.ne.s32.totalorder %s120, %s121
    %p133 = scmp.eq.s32.totalorder %s27, 1
    %p134 = por %p132, %p133
    %p136 = scmp.ne.s32.totalorder %s121, %s135
    %p137 = scmp.eq.s32.totalorder %s27, 0
    %p138 = por %p136, %p137
    %s140 = sadd.s32 %s139, 1
    %p143 = scmp.eq.s32.totalorder %s21, 1
    %p144 = scmp.ne.s32.totalorder %s139, %s141
    %p145 = scmp.eq.s32.totalorder %s21, 0
    %p146 = por %p144, %p145
    %p147 = scmp.ne.s32.totalorder %s139, %s141
    %p148 = scmp.eq.s32.totalorder %s26, 1
    %p149 = por %p147, %p148
    %p150 = scmp.ne.s32.totalorder %s141, %s142
    %p151 = scmp.eq.s32.totalorder %s26, 0
    %p152 = por %p150, %p151
    %p153 = scmp.ne.s32.totalorder %s141, %s142
    %p154 = scmp.eq.s32.totalorder %s27, 1
    %p155 = por %p153, %p154
    %p157 = scmp.ne.s32.totalorder %s142, %s156
    %p158 = scmp.eq.s32.totalorder %s27, 0
    %p159 = por %p157, %p158
    %s161 = sadd.s32 %s160, 1
    %p164 = scmp.eq.s32.totalorder %s21, 1
    %p165 = scmp.ne.s32.totalorder %s160, %s162
    %p166 = scmp.eq.s32.totalorder %s21, 0
    %p167 = por %p165, %p166
    %p168 = scmp.ne.s32.totalorder %s160, %s162
    %p169 = scmp.eq.s32.totalorder %s26, 1
    %p170 = por %p168, %p169
    %p171 = scmp.ne.s32.totalorder %s162, %s163
    %p172 = scmp.eq.s32.totalorder %s26, 0
    %p173 = por %p171, %p172
    %p174 = scmp.ne.s32.totalorder %s162, %s163
    %p175 = scmp.eq.s32.totalorder %s27, 1
    %p176 = por %p174, %p175
    %p178 = scmp.ne.s32.totalorder %s163, %s177
    %p179 = scmp.eq.s32.totalorder %s27, 0
    %p180 = por %p178, %p179
    %s182 = sadd.s32 %s181, 1
    %p185 = scmp.eq.s32.totalorder %s21, 1
    %p186 = scmp.ne.s32.totalorder %s181, %s183
    %p187 = scmp.eq.s32.totalorder %s21, 0
    %p188 = por %p186, %p187
    %p189 = scmp.ne.s32.totalorder %s181, %s183
    %p190 = scmp.eq.s32.totalorder %s26, 1
    %p191 = por %p189, %p190
    %p192 = scmp.ne.s32.totalorder %s183, %s184
    %p193 = scmp.eq.s32.totalorder %s26, 0
    %p194 = por %p192, %p193
    %p195 = scmp.ne.s32.totalorder %s183, %s184
    %p196 = scmp.eq.s32.totalorder %s27, 1
    %p197 = por %p195, %p196
    %p199 = scmp.ne.s32.totalorder %s184, %s198
    %p200 = scmp.eq.s32.totalorder %s27, 0
    %p201 = por %p199, %p200
    %s203 = sadd.s32 %s202, 1
    %p206 = scmp.eq.s32.totalorder %s21, 1
    %p207 = scmp.ne.s32.totalorder %s202, %s204
    %p208 = scmp.eq.s32.totalorder %s21, 0
    %p209 = por %p207, %p208
    %p210 = scmp.ne.s32.totalorder %s202, %s204
    %p211 = scmp.eq.s32.totalorder %s26, 1
    %p212 = por %p210, %p211
    %p213 = scmp.ne.s32.totalorder %s204, %s205
    %p214 = scmp.eq.s32.totalorder %s26, 0
    %p215 = por %p213, %p214
    %p216 = scmp.ne.s32.totalorder %s204, %s205
    %p217 = scmp.eq.s32.totalorder %s27, 1
    %p218 = por %p216, %p217
    %p220 = scmp.ne.s32.totalorder %s205, %s219
    %p221 = scmp.eq.s32.totalorder %s27, 0
    %p222 = por %p220, %p221
    %s224 = sadd.s32 %s223, 1
    %p227 = scmp.eq.s32.totalorder %s21, 1
    %p228 = scmp.ne.s32.totalorder %s223, %s225
    %p229 = scmp.eq.s32.totalorder %s21, 0
    %p230 = por %p228, %p229
    %p231 = scmp.ne.s32.totalorder %s223, %s225
    %p232 = scmp.eq.s32.totalorder %s26, 1
    %p233 = por %p231, %p232
    %p234 = scmp.ne.s32.totalorder %s225, %s226
    %p235 = scmp.eq.s32.totalorder %s26, 0
    %p236 = por %p234, %p235
    %p237 = scmp.ne.s32.totalorder %s225, %s226
    %p238 = scmp.eq.s32.totalorder %s27, 1
    %p239 = por %p237, %p238
    %p241 = scmp.ne.s32.totalorder %s226, %s240
    %p242 = scmp.eq.s32.totalorder %s27, 0
    %p243 = por %p241, %p242
    %s245 = sadd.s32 %s244, 1
    %p248 = scmp.eq.s32.totalorder %s21, 1
    %p249 = scmp.ne.s32.totalorder %s244, %s246
    %p250 = scmp.eq.s32.totalorder %s21, 0
    %p251 = por %p249, %p250
    %p252 = scmp.ne.s32.totalorder %s244, %s246
    %p253 = scmp.eq.s32.totalorder %s26, 1
    %p254 = por %p252, %p253
    %p255 = scmp.ne.s32.totalorder %s246, %s247
    %p256 = scmp.eq.s32.totalorder %s26, 0
    %p257 = por %p255, %p256
    %p258 = scmp.ne.s32.totalorder %s246, %s247
    %p259 = scmp.eq.s32.totalorder %s27, 1
    %p260 = por %p258, %p259
    %p262 = scmp.ne.s32.totalorder %s247, %s261
    %p263 = scmp.eq.s32.totalorder %s27, 0
    %p264 = por %p262, %p263
    %s266 = sadd.s32 %s265, 1
    %p269 = scmp.eq.s32.totalorder %s21, 1
    %p270 = scmp.ne.s32.totalorder %s265, %s267
    %p271 = scmp.eq.s32.totalorder %s21, 0
    %p272 = por %p270, %p271
    %p273 = scmp.ne.s32.totalorder %s265, %s267
    %p274 = scmp.eq.s32.totalorder %s26, 1
    %p275 = por %p273, %p274
    %p276 = scmp.ne.s32.totalorder %s267, %s268
    %p277 = scmp.eq.s32.totalorder %s26, 0
    %p278 = por %p276, %p277
    %p279 = scmp.ne.s32.totalorder %s267, %s268
    %p280 = scmp.eq.s32.totalorder %s27, 1
    %p281 = por %p279, %p280
    %p283 = scmp.ne.s32.totalorder %s268, %s282
    %p284 = scmp.eq.s32.totalorder %s27, 0
    %p285 = por %p283, %p284
    %s287 = sadd.s32 %s286, 1
    %p290 = scmp.eq.s32.totalorder %s21, 1
    %p291 = scmp.ne.s32.totalorder %s286, %s288
    %p292 = scmp.eq.s32.totalorder %s21, 0
    %p293 = por %p291, %p292
    %p294 = scmp.ne.s32.totalorder %s286, %s288
    %p295 = scmp.eq.s32.totalorder %s26, 1
    %p296 = por %p294, %p295
    %p297 = scmp.ne.s32.totalorder %s288, %s289
    %p298 = scmp.eq.s32.totalorder %s26, 0
    %p299 = por %p297, %p298
    %p300 = scmp.ne.s32.totalorder %s288, %s289
    %p301 = scmp.eq.s32.totalorder %s27, 1
    %p302 = por %p300, %p301
    %p304 = scmp.ne.s32.totalorder %s289, %s303
    %p305 = scmp.eq.s32.totalorder %s27, 0
    %p306 = por %p304, %p305
    %s307 = ssub.s32 %s21, %s28
    %p308 = scmp.eq.s32.totalorder %s307, 0
    %s310 = sadd.s32 %s309, 1
    %s311 = scalar_select %p308, %s309, %s310
    %p314 = pneg %p308
    %p315 = scmp.eq.s32.totalorder %s21, 1
    %p316 = por %p314, %p315
    %p317 = scmp.ne.s32.totalorder %s309, %s312
    %p318 = scmp.eq.s32.totalorder %s21, 0
    %p319 = por %p317, %p318
    %p320 = scmp.ne.s32.totalorder %s309, %s312
    %p321 = scmp.eq.s32.totalorder %s26, 1
    %p322 = por %p320, %p321
    %p323 = scmp.ne.s32.totalorder %s312, %s313
    %p324 = scmp.eq.s32.totalorder %s26, 0
    %p325 = por %p323, %p324
    %p326 = scmp.ne.s32.totalorder %s312, %s313
    %p327 = scmp.eq.s32.totalorder %s27, 1
    %p328 = por %p326, %p327
    %p330 = scmp.ne.s32.totalorder %s313, %s329
    %p331 = scmp.eq.s32.totalorder %s27, 0
    %p332 = por %p330, %p331
    %p333 = scmp.le.s32.totalorder 1, %s21
    %p334 = scmp.lt.s32.totalorder %s21, 3
    %p335 = pnand %p333, %p334
    %p336 = pneg %p335
    // Predicated region
    $region9: #{tpu_custom_call.1} parent=5 // pred_check
      _
    $region10: #{tpu_custom_call.1} parent=5 // pred_check_branch
      %338 = sbr.rel (%p335) target = $region12
    $region11: #{tpu_custom_call.1} parent=5 // pred_region
      %s339 = ssub.s32 %s21, 1
      // Predicated region
      $region13: #{tpu_custom_call.1} parent=11 // pred_check
        %p340 = pneg %p68
      $region14: #{tpu_custom_call.1} parent=11 // pred_check_branch
        %342 = sbr.rel (%p340) target = $region16
      $region15: #{tpu_custom_call.1} parent=11 // pred_region
        _
      $region16: #{tpu_custom_call.1} parent=11 // pred_fallthru
        _
      // Predicated region
      $region17: #{tpu_custom_call.1} parent=11 // pred_check
        %p343 = pneg %p89
      $region18: #{tpu_custom_call.1} parent=11 // pred_check_branch
        %345 = sbr.rel (%p343) target = $region20
      $region19: #{tpu_custom_call.1} parent=11 // pred_region
        _
      $region20: #{tpu_custom_call.1} parent=11 // pred_fallthru
        _
      // Predicated region
      $region21: #{tpu_custom_call.1} parent=11 // pred_check
        %p346 = pneg %p110
      $region22: #{tpu_custom_call.1} parent=11 // pred_check_branch
        %348 = sbr.rel (%p346) target = $region24
      $region23: #{tpu_custom_call.1} parent=11 // pred_region
        _
      $region24: #{tpu_custom_call.1} parent=11 // pred_fallthru
        _
      // Predicated region
      $region25: #{tpu_custom_call.1} parent=11 // pred_check
        %p349 = pneg %p131
      $region26: #{tpu_custom_call.1} parent=11 // pred_check_branch
        %351 = sbr.rel (%p349) target = $region28
      $region27: #{tpu_custom_call.1} parent=11 // pred_region
        _
      $region28: #{tpu_custom_call.1} parent=11 // pred_fallthru
        _
      // Predicated region
      $region29: #{tpu_custom_call.1} parent=11 // pred_check
        %p352 = pneg %p152
      $region30: #{tpu_custom_call.1} parent=11 // pred_check_branch
        %354 = sbr.rel (%p352) target = $region32
      $region31: #{tpu_custom_call.1} parent=11 // pred_region
        _
      $region32: #{tpu_custom_call.1} parent=11 // pred_fallthru
        _
      // Predicated region
      $region33: #{tpu_custom_call.1} parent=11 // pred_check
        %p355 = pneg %p173
      $region34: #{tpu_custom_call.1} parent=11 // pred_check_branch
        %357 = sbr.rel (%p355) target = $region36
      $region35: #{tpu_custom_call.1} parent=11 // pred_region
        _
      $region36: #{tpu_custom_call.1} parent=11 // pred_fallthru
        _
      // Predicated region
      $region37: #{tpu_custom_call.1} parent=11 // pred_check
        %p358 = pneg %p194
      $region38: #{tpu_custom_call.1} parent=11 // pred_check_branch
        %360 = sbr.rel (%p358) target = $region40
      $region39: #{tpu_custom_call.1} parent=11 // pred_region
        _
      $region40: #{tpu_custom_call.1} parent=11 // pred_fallthru
        _
      // Predicated region
      $region41: #{tpu_custom_call.1} parent=11 // pred_check
        %p361 = pneg %p215
      $region42: #{tpu_custom_call.1} parent=11 // pred_check_branch
        %363 = sbr.rel (%p361) target = $region44
      $region43: #{tpu_custom_call.1} parent=11 // pred_region
        _
      $region44: #{tpu_custom_call.1} parent=11 // pred_fallthru
        _
      // Predicated region
      $region45: #{tpu_custom_call.1} parent=11 // pred_check
        %p364 = pneg %p236
      $region46: #{tpu_custom_call.1} parent=11 // pred_check_branch
        %366 = sbr.rel (%p364) target = $region48
      $region47: #{tpu_custom_call.1} parent=11 // pred_region
        _
      $region48: #{tpu_custom_call.1} parent=11 // pred_fallthru
        _
      // Predicated region
      $region49: #{tpu_custom_call.1} parent=11 // pred_check
        %p367 = pneg %p257
      $region50: #{tpu_custom_call.1} parent=11 // pred_check_branch
        %369 = sbr.rel (%p367) target = $region52
      $region51: #{tpu_custom_call.1} parent=11 // pred_region
        _
      $region52: #{tpu_custom_call.1} parent=11 // pred_fallthru
        _
      // Predicated region
      $region53: #{tpu_custom_call.1} parent=11 // pred_check
        %p370 = pneg %p278
      $region54: #{tpu_custom_call.1} parent=11 // pred_check_branch
        %372 = sbr.rel (%p370) target = $region56
      $region55: #{tpu_custom_call.1} parent=11 // pred_region
        _
      $region56: #{tpu_custom_call.1} parent=11 // pred_fallthru
        _
      // Predicated region
      $region57: #{tpu_custom_call.1} parent=11 // pred_check
        %p373 = pneg %p299
      $region58: #{tpu_custom_call.1} parent=11 // pred_check_branch
        %375 = sbr.rel (%p373) target = $region60
      $region59: #{tpu_custom_call.1} parent=11 // pred_region
        _
      $region60: #{tpu_custom_call.1} parent=11 // pred_fallthru
        _
    $region12: #{tpu_custom_call.1} parent=5 // pred_fallthru
      _
    %p376 = scmp.lt.s32.totalorder %s21, 2
    // Predicated region
    $region61: #{tpu_custom_call.1} parent=5 // pred_check
      %p377 = pneg %p376
    $region62: #{tpu_custom_call.1} parent=5 // pred_check_branch
      %379 = sbr.rel (%p377) target = $region64
    $region63: #{tpu_custom_call.1} parent=5 // pred_region
      // Predicated region
      $region65: #{tpu_custom_call.1} parent=63 // pred_check
        %p380 = pneg %p41
      $region66: #{tpu_custom_call.1} parent=63 // pred_check_branch
        %382 = sbr.rel (%p380) target = $region68
      $region67: #{tpu_custom_call.1} parent=63 // pred_region
        %s383 = smul.u32 16, %s21
        %p384 = scmp.lt.s32.totalorder %s383, 31
        %s385 = scalar_select %p384, %s383, 31
        %s386 = smul.addr %s385, 8
        %s387 = scalar_lea.vmem %s0, %s386
        %s388 = smul.u32 16, %s21
      $region68: #{tpu_custom_call.1} parent=63 // pred_fallthru
        _
    $region64: #{tpu_custom_call.1} parent=5 // pred_fallthru
      _
    %p389 = scmp.le.s32.totalorder 1, %s21
    %p390 = scmp.lt.s32.totalorder %s21, 3
    %p391 = pnand %p389, %p390
    %p392 = pneg %p391
    // Predicated region
    $region69: #{tpu_custom_call.1} parent=5 // pred_check
      _
    $region70: #{tpu_custom_call.1} parent=5 // pred_check_branch
      %394 = sbr.rel (%p391) target = $region72
    $region71: #{tpu_custom_call.1} parent=5 // pred_region
      %s395 = ssub.s32 %s21, 1
      %s396 = smul.u32 16, %s26
      %p397 = scmp.lt.s32.totalorder %s396, 31
      %s398 = scalar_select %p397, %s396, 31
      %s399 = smul.addr %s398, 8
      %s400 = scalar_lea.vmem %s0, %s399
      %p401 = pneg %p47
      %p402 = pneg %p44
      %p403 = pneg %p68
      %p404 = pneg %p65
      %p405 = pneg %p89
      %p406 = pneg %p86
      %p407 = pneg %p110
      %p408 = pneg %p107
      %p409 = pneg %p131
      %p410 = pneg %p128
      %p411 = pneg %p152
      %p412 = pneg %p149
      %p413 = pneg %p173
      %p414 = pneg %p170
      %p415 = pneg %p194
      %p416 = pneg %p191
      %p417 = pneg %p215
      %p418 = pneg %p212
      %p419 = pneg %p236
      %p420 = pneg %p233
      %p421 = pneg %p257
      %p422 = pneg %p254
      %p423 = pneg %p278
      %p424 = pneg %p275
      %p425 = pneg %p299
      %p426 = pneg %p296
      %p427 = pneg %p325
      %p428 = pneg %p322
      %s429 = smul.u32 16, %s26
      %p430 = scmp.lt.s32.totalorder %s429, 31
      %s431 = scalar_select %p430, %s429, 31
      %s432 = smul.addr %s431, 8
      %s433 = scalar_lea.vmem %s13, %s432
      %s434 = smul.u32 16, %s26
      %p435 = scmp.lt.s32.totalorder %s434, 31
      %s436 = scalar_select %p435, %s434, 31
      %s437 = smul.addr %s436, 8
      %s438 = scalar_lea.vmem %s0, %s437
      %s439 = smul.u32 16, %s26
      %s440 = smul.u32 16, %s26
      %p441 = scmp.lt.s32.totalorder %s440, 31
      %s442 = scalar_select %p441, %s440, 31
      %s443 = smul.addr %s442, 8
      %s444 = scalar_lea.vmem %s13, %s443
      %s445 = smul.u32 16, %s26
      %v447 = vld [vmem:[%s438] sm:$0xff]
      %v448 = vld [vmem:[%s438 + $0x8] sm:$0xff]
      %v449 = vld [vmem:[%s438 + $0x10] sm:$0xff]
      %v450 = vld [vmem:[%s438 + $0x18] sm:$0xff]
      %v451 = vld [vmem:[%s438 + $0x20] sm:$0xff]
      %v452 = vld [vmem:[%s438 + $0x28] sm:$0xff]
      %v453 = vld [vmem:[%s438 + $0x30] sm:$0xff]
      %v454 = vld [vmem:[%s438 + $0x38] sm:$0xff]
      %v455 = vld [vmem:[%s438 + $0x40] sm:$0xff]
      %v456 = vld [vmem:[%s438 + $0x48] sm:$0xff]
      %v457 = vld [vmem:[%s438 + $0x50] sm:$0xff]
      %v458 = vld [vmem:[%s438 + $0x58] sm:$0xff]
      %v459 = vld [vmem:[%s438 + $0x60] sm:$0xff]
      %v460 = vld [vmem:[%s438 + $0x68] sm:$0xff]
      %v461 = vld [vmem:[%s438 + $0x70] sm:$0xff]
      %v462 = vld [vmem:[%s438 + $0x78] sm:$0xff]
      %v463 = vpack.c.bf16 %v448, %v447
      %v464 = vpack.c.bf16 %v450, %v449
      %v465 = vpack.c.bf16 %v452, %v451
      %v466 = vpack.c.bf16 %v454, %v453
      %v467 = vpack.c.bf16 %v456, %v455
      %v468 = vpack.c.bf16 %v458, %v457
      %v469 = vpack.c.bf16 %v460, %v459
      %v470 = vpack.c.bf16 %v462, %v461
      %v471 = vld [vmem:[%s1] sm:$0xf]
      %v472 = vld [vmem:[%s1 + $0x4] sm:$0xf]
      %v473 = vld [vmem:[%s2] sm:$0x1]
      %v475 = vlaneseq
      %v476 = vshrl.u32 %v475, 7
      %v477 = vsub.s32 0, %v476
      %v478 = vrot.slane %v473, %v477
      %v482 = vunpack.c.l.b16 %v471
      %v483 = vunpack.c.l.b16 %v472
      %v484 = vpack.c.b16 %v483, %v482
      %vm486 = vcmask 130048
      %v488 = vsel %vm486, %v463, 0
      %v491 = vsel %vm486, %v464, 0
      %v494 = vsel %vm486, %v465, 0
      %v497 = vsel %vm486, %v466, 0
      %v500 = vsel %vm486, %v467, 0
      %v503 = vsel %vm486, %v468, 0
      %v506 = vsel %vm486, %v469, 0
      %v509 = vsel %vm486, %v470, 0
      %511 = vmatprep.subr.bf16.mxu0 0
      %512 = vmatpush1.bf16.msra.mxu0 0
      %513 = vmatprep.subr.bf16.mxu0 0
      %514 = vmatpush1.bf16.msra.mxu0 0
      %515 = vmatprep.subr.bf16.mxu0 0
      %516 = vmatpush1.bf16.msra.mxu0 0
      %517 = vmatprep.subr.bf16.mxu0 0
      %518 = vmatpush1.bf16.msra.mxu0 0
      %519 = vmatprep.subr.bf16.mxu0 0
      %520 = vmatpush1.bf16.msra.mxu0 0
      %521 = vmatprep.subr.bf16.mxu0 0
      %522 = vmatpush1.bf16.msra.mxu0 0
      %523 = vmatprep.subr.bf16.mxu0 0
      %524 = vmatpush1.bf16.msra.mxu0 0
      %525 = vmatprep.subr.bf16.mxu0 0
      %526 = vmatpush1.bf16.msra.mxu0 %v484
      %527 = vmatprep.subr.bf16.mxu0 0
      %528 = vmatpush2.bf16.msra.mxu0 0
      %529 = vmatprep.subr.bf16.mxu0 0
      %530 = vmatpush2.bf16.msra.mxu0 0
      %531 = vmatprep.subr.bf16.mxu0 0
      %532 = vmatpush2.bf16.msra.mxu0 0
      %533 = vmatprep.subr.bf16.mxu0 0
      %534 = vmatpush2.bf16.msra.mxu0 0
      %535 = vmatprep.subr.bf16.mxu0 0
      %536 = vmatpush2.bf16.msra.mxu0 0
      %537 = vmatprep.subr.bf16.mxu0 0
      %538 = vmatpush2.bf16.msra.mxu0 0
      %539 = vmatprep.subr.bf16.mxu0 0
      %540 = vmatpush2.bf16.msra.mxu0 0
      %541 = vmatprep.subr.bf16.mxu0 0
      %542 = vmatpush2.bf16.msra.mxu0 0
      %543 = vmatprep.mubr.bf16.mxu0 0
      %544 = vmatmul.mubr.bf16.gmra.mxu0 %v488
      %v545 = vpop.f32.mrf.mxu0
      %v546 = vadd.f32 %v478, %v545
      %v547 = vpop.f32.mrf.mxu0
      %v548 = vpop.f32.mrf.mxu0
      %v549 = vadd.f32 %v478, %v548
      %v550 = vpop.f32.mrf.mxu0
      %551 = vmatprep.mubr.bf16.mxu0 0
      %552 = vmatmul.mubr.bf16.gmra.mxu0 %v491
      %v553 = vpop.f32.mrf.mxu0
      %v554 = vadd.f32 %v478, %v553
      %v555 = vpop.f32.mrf.mxu0
      %v556 = vpop.f32.mrf.mxu0
      %v557 = vadd.f32 %v478, %v556
      %v558 = vpop.f32.mrf.mxu0
      %559 = vmatprep.mubr.bf16.mxu0 0
      %560 = vmatmul.mubr.bf16.gmra.mxu0 %v494
      %v561 = vpop.f32.mrf.mxu0
      %v562 = vadd.f32 %v478, %v561
      %v563 = vpop.f32.mrf.mxu0
      %v564 = vpop.f32.mrf.mxu0
      %v565 = vadd.f32 %v478, %v564
      %v566 = vpop.f32.mrf.mxu0
      %567 = vmatprep.mubr.bf16.mxu0 0
      %568 = vmatmul.mubr.bf16.gmra.mxu0 %v497
      %v569 = vpop.f32.mrf.mxu0
      %v570 = vadd.f32 %v478, %v569
      %v571 = vpop.f32.mrf.mxu0
      %v572 = vpop.f32.mrf.mxu0
      %v573 = vadd.f32 %v478, %v572
      %v574 = vpop.f32.mrf.mxu0
      %575 = vmatprep.mubr.bf16.mxu0 0
      %576 = vmatmul.mubr.bf16.gmra.mxu0 %v500
      %v577 = vpop.f32.mrf.mxu0
      %v578 = vadd.f32 %v478, %v577
      %v579 = vpop.f32.mrf.mxu0
      %v580 = vpop.f32.mrf.mxu0
      %v581 = vadd.f32 %v478, %v580
      %v582 = vpop.f32.mrf.mxu0
      %583 = vmatprep.mubr.bf16.mxu0 0
      %584 = vmatmul.mubr.bf16.gmra.mxu0 %v503
      %v585 = vpop.f32.mrf.mxu0
      %v586 = vadd.f32 %v478, %v585
      %v587 = vpop.f32.mrf.mxu0
      %v588 = vpop.f32.mrf.mxu0
      %v589 = vadd.f32 %v478, %v588
      %v590 = vpop.f32.mrf.mxu0
      %591 = vmatprep.mubr.bf16.mxu0 0
      %592 = vmatmul.mubr.bf16.gmra.mxu0 %v506
      %v593 = vpop.f32.mrf.mxu0
      %v594 = vadd.f32 %v478, %v593
      %v595 = vpop.f32.mrf.mxu0
      %v596 = vpop.f32.mrf.mxu0
      %v597 = vadd.f32 %v478, %v596
      %v598 = vpop.f32.mrf.mxu0
      %599 = vmatprep.mubr.bf16.mxu0 0
      %600 = vmatmul.mubr.bf16.gmra.mxu0 %v509
      %v601 = vpop.f32.mrf.mxu0
      %v602 = vadd.f32 %v478, %v601
      %v603 = vpop.f32.mrf.mxu0
      %v604 = vpop.f32.mrf.mxu0
      %v605 = vadd.f32 %v478, %v604
      %v606 = vpop.f32.mrf.mxu0
      %607 = vdwg.mxu0
      %v608 = vmax.f32 %v546, 0.0
      %v609 = vmax.f32 %v549, 0.0
      %v610 = vmax.f32 %v554, 0.0
      %v611 = vmax.f32 %v557, 0.0
      %v612 = vmax.f32 %v562, 0.0
      %v613 = vmax.f32 %v565, 0.0
      %v614 = vmax.f32 %v570, 0.0
      %v615 = vmax.f32 %v573, 0.0
      %v616 = vmax.f32 %v578, 0.0
      %v617 = vmax.f32 %v581, 0.0
      %v618 = vmax.f32 %v586, 0.0
      %v619 = vmax.f32 %v589, 0.0
      %v620 = vmax.f32 %v594, 0.0
      %v621 = vmax.f32 %v597, 0.0
      %v622 = vmax.f32 %v602, 0.0
      %v623 = vmax.f32 %v605, 0.0
      %v624 = vpack.c.bf16 %v609, %v608
      %v625 = vpack.c.bf16 %v611, %v610
      %v626 = vpack.c.bf16 %v613, %v612
      %v627 = vpack.c.bf16 %v615, %v614
      %v628 = vpack.c.bf16 %v617, %v616
      %v629 = vpack.c.bf16 %v619, %v618
      %v630 = vpack.c.bf16 %v621, %v620
      %v631 = vpack.c.bf16 %v623, %v622
      %v632 = vld [vmem:[%s3] sm:$0xf]
      %v633 = vld [vmem:[%s3 + $0x4] sm:$0xf]
      %v634 = vld [vmem:[%s3 + $0x8] sm:$0xf]
      %v635 = vld [vmem:[%s3 + $0xc] sm:$0xf]
      %v636 = vld [vmem:[%s3 + $0x10] sm:$0xf]
      %v637 = vld [vmem:[%s3 + $0x14] sm:$0xf]
      %v638 = vld [vmem:[%s3 + $0x18] sm:$0xf]
      %v639 = vld [vmem:[%s3 + $0x1c] sm:$0xf]
      %v640 = vld [vmem:[%s4] sm:$0x1]
      %v642 = vlaneseq
      %v643 = vshrl.u32 %v642, 7
      %v644 = vsub.s32 0, %v643
      %v645 = vrot.slane %v640, %v644
      %v655 = vunpack.c.l.b16 %v632
      %v656 = vunpack.c.l.b16 %v633
      %v657 = vunpack.c.l.b16 %v634
      %v658 = vunpack.c.l.b16 %v635
      %v659 = vunpack.c.l.b16 %v636
      %v660 = vunpack.c.l.b16 %v637
      %v661 = vunpack.c.l.b16 %v638
      %v662 = vunpack.c.l.b16 %v639
      %v663 = vpack.c.b16 %v656, %v655
      %v664 = vpack.c.b16 %v658, %v657
      %v665 = vpack.c.b16 %v660, %v659
      %v666 = vpack.c.b16 %v662, %v661
      %vm671 = vcmask 523264
      %v673 = vsel %vm671, %v624, 0
      %v676 = vsel %vm671, %v625, 0
      %v679 = vsel %vm671, %v626, 0
      %v682 = vsel %vm671, %v627, 0
      %v685 = vsel %vm671, %v628, 0
      %v688 = vsel %vm671, %v629, 0
      %v691 = vsel %vm671, %v630, 0
      %v694 = vsel %vm671, %v631, 0
      %696 = vmatprep.subr.bf16.mxu0 0
      %697 = vmatpush1.bf16.msra.mxu0 0
      %698 = vmatprep.subr.bf16.mxu0 0
      %699 = vmatpush1.bf16.msra.mxu0 0
      %700 = vmatprep.subr.bf16.mxu0 0
      %701 = vmatpush1.bf16.msra.mxu0 0
      %702 = vmatprep.subr.bf16.mxu0 0
      %703 = vmatpush1.bf16.msra.mxu0 0
      %704 = vmatprep.subr.bf16.mxu0 0
      %705 = vmatpush1.bf16.msra.mxu0 %v666
      %706 = vmatprep.subr.bf16.mxu0 0
      %707 = vmatpush1.bf16.msra.mxu0 %v665
      %708 = vmatprep.subr.bf16.mxu0 0
      %709 = vmatpush1.bf16.msra.mxu0 %v664
      %710 = vmatprep.subr.bf16.mxu0 0
      %711 = vmatpush1.bf16.msra.mxu0 %v663
      %712 = vmatprep.subr.bf16.mxu0 0
      %713 = vmatpush2.bf16.msra.mxu0 0
      %714 = vmatprep.subr.bf16.mxu0 0
      %715 = vmatpush2.bf16.msra.mxu0 0
      %716 = vmatprep.subr.bf16.mxu0 0
      %717 = vmatpush2.bf16.msra.mxu0 0
      %718 = vmatprep.subr.bf16.mxu0 0
      %719 = vmatpush2.bf16.msra.mxu0 0
      %720 = vmatprep.subr.bf16.mxu0 0
      %721 = vmatpush2.bf16.msra.mxu0 0
      %722 = vmatprep.subr.bf16.mxu0 0
      %723 = vmatpush2.bf16.msra.mxu0 0
      %724 = vmatprep.subr.bf16.mxu0 0
      %725 = vmatpush2.bf16.msra.mxu0 0
      %726 = vmatprep.subr.bf16.mxu0 0
      %727 = vmatpush2.bf16.msra.mxu0 0
      %728 = vmatprep.mubr.bf16.mxu0 0
      %729 = vmatmul.mubr.bf16.gmra.mxu0 %v673
      %v730 = vpop.f32.mrf.mxu0
      %v731 = vadd.f32 %v645, %v730
      %v732 = vpop.f32.mrf.mxu0
      %v733 = vpop.f32.mrf.mxu0
      %v734 = vadd.f32 %v645, %v733
      %v735 = vpop.f32.mrf.mxu0
      %736 = vmatprep.mubr.bf16.mxu0 0
      %737 = vmatmul.mubr.bf16.gmra.mxu0 %v676
      %v738 = vpop.f32.mrf.mxu0
      %v739 = vadd.f32 %v645, %v738
      %v740 = vpop.f32.mrf.mxu0
      %v741 = vpop.f32.mrf.mxu0
      %v742 = vadd.f32 %v645, %v741
      %v743 = vpop.f32.mrf.mxu0
      %744 = vmatprep.mubr.bf16.mxu0 0
      %745 = vmatmul.mubr.bf16.gmra.mxu0 %v679
      %v746 = vpop.f32.mrf.mxu0
      %v747 = vadd.f32 %v645, %v746
      %v748 = vpop.f32.mrf.mxu0
      %v749 = vpop.f32.mrf.mxu0
      %v750 = vadd.f32 %v645, %v749
      %v751 = vpop.f32.mrf.mxu0
      %752 = vmatprep.mubr.bf16.mxu0 0
      %753 = vmatmul.mubr.bf16.gmra.mxu0 %v682
      %v754 = vpop.f32.mrf.mxu0
      %v755 = vadd.f32 %v645, %v754
      %v756 = vpop.f32.mrf.mxu0
      %v757 = vpop.f32.mrf.mxu0
      %v758 = vadd.f32 %v645, %v757
      %v759 = vpop.f32.mrf.mxu0
      %760 = vmatprep.mubr.bf16.mxu0 0
      %761 = vmatmul.mubr.bf16.gmra.mxu0 %v685
      %v762 = vpop.f32.mrf.mxu0
      %v763 = vadd.f32 %v645, %v762
      %v764 = vpop.f32.mrf.mxu0
      %v765 = vpop.f32.mrf.mxu0
      %v766 = vadd.f32 %v645, %v765
      %v767 = vpop.f32.mrf.mxu0
      %768 = vmatprep.mubr.bf16.mxu0 0
      %769 = vmatmul.mubr.bf16.gmra.mxu0 %v688
      %v770 = vpop.f32.mrf.mxu0
      %v771 = vadd.f32 %v645, %v770
      %v772 = vpop.f32.mrf.mxu0
      %v773 = vpop.f32.mrf.mxu0
      %v774 = vadd.f32 %v645, %v773
      %v775 = vpop.f32.mrf.mxu0
      %776 = vmatprep.mubr.bf16.mxu0 0
      %777 = vmatmul.mubr.bf16.gmra.mxu0 %v691
      %v778 = vpop.f32.mrf.mxu0
      %v779 = vadd.f32 %v645, %v778
      %v780 = vpop.f32.mrf.mxu0
      %v781 = vpop.f32.mrf.mxu0
      %v782 = vadd.f32 %v645, %v781
      %v783 = vpop.f32.mrf.mxu0
      %784 = vmatprep.mubr.bf16.mxu0 0
      %785 = vmatmul.mubr.bf16.gmra.mxu0 %v694
      %v786 = vpop.f32.mrf.mxu0
      %v787 = vadd.f32 %v645, %v786
      %v788 = vpop.f32.mrf.mxu0
      %v789 = vpop.f32.mrf.mxu0
      %v790 = vadd.f32 %v645, %v789
      %v791 = vpop.f32.mrf.mxu0
      %792 = vdwg.mxu0
      %v793 = vmax.f32 %v731, 0.0
      %v794 = vmax.f32 %v734, 0.0
      %v795 = vmax.f32 %v739, 0.0
      %v796 = vmax.f32 %v742, 0.0
      %v797 = vmax.f32 %v747, 0.0
      %v798 = vmax.f32 %v750, 0.0
      %v799 = vmax.f32 %v755, 0.0
      %v800 = vmax.f32 %v758, 0.0
      %v801 = vmax.f32 %v763, 0.0
      %v802 = vmax.f32 %v766, 0.0
      %v803 = vmax.f32 %v771, 0.0
      %v804 = vmax.f32 %v774, 0.0
      %v805 = vmax.f32 %v779, 0.0
      %v806 = vmax.f32 %v782, 0.0
      %v807 = vmax.f32 %v787, 0.0
      %v808 = vmax.f32 %v790, 0.0
      %v809 = vpack.c.bf16 %v794, %v793
      %v810 = vpack.c.bf16 %v796, %v795
      %v811 = vpack.c.bf16 %v798, %v797
      %v812 = vpack.c.bf16 %v800, %v799
      %v813 = vpack.c.bf16 %v802, %v801
      %v814 = vpack.c.bf16 %v804, %v803
      %v815 = vpack.c.bf16 %v806, %v805
      %v816 = vpack.c.bf16 %v808, %v807
      %v817 = vld [vmem:[%s5] sm:$0xf]
      %v818 = vld [vmem:[%s5 + $0x4] sm:$0xf]
      %v819 = vld [vmem:[%s5 + $0x8] sm:$0xf]
      %v820 = vld [vmem:[%s5 + $0xc] sm:$0xf]
      %v821 = vld [vmem:[%s5 + $0x10] sm:$0xf]
      %v822 = vld [vmem:[%s5 + $0x14] sm:$0xf]
      %v823 = vld [vmem:[%s5 + $0x18] sm:$0xf]
      %v824 = vld [vmem:[%s5 + $0x1c] sm:$0xf]
      %v825 = vld [vmem:[%s6] sm:$0x1]
      %v827 = vlaneseq
      %v828 = vshrl.u32 %v827, 7
      %v829 = vsub.s32 0, %v828
      %v830 = vrot.slane %v825, %v829
      %v840 = vunpack.c.l.b16 %v817
      %v841 = vunpack.c.l.b16 %v818
      %v842 = vunpack.c.l.b16 %v819
      %v843 = vunpack.c.l.b16 %v820
      %v844 = vunpack.c.l.b16 %v821
      %v845 = vunpack.c.l.b16 %v822
      %v846 = vunpack.c.l.b16 %v823
      %v847 = vunpack.c.l.b16 %v824
      %v848 = vpack.c.b16 %v841, %v840
      %v849 = vpack.c.b16 %v843, %v842
      %v850 = vpack.c.b16 %v845, %v844
      %v851 = vpack.c.b16 %v847, %v846
      %v857 = vsel %vm671, %v809, 0
      %v860 = vsel %vm671, %v810, 0
      %v863 = vsel %vm671, %v811, 0
      %v866 = vsel %vm671, %v812, 0
      %v869 = vsel %vm671, %v813, 0
      %v872 = vsel %vm671, %v814, 0
      %v875 = vsel %vm671, %v815, 0
      %v878 = vsel %vm671, %v816, 0
      %880 = vmatprep.subr.bf16.mxu0 0
      %881 = vmatpush1.bf16.msra.mxu0 0
      %882 = vmatprep.subr.bf16.mxu0 0
      %883 = vmatpush1.bf16.msra.mxu0 0
      %884 = vmatprep.subr.bf16.mxu0 0
      %885 = vmatpush1.bf16.msra.mxu0 0
      %886 = vmatprep.subr.bf16.mxu0 0
      %887 = vmatpush1.bf16.msra.mxu0 0
      %888 = vmatprep.subr.bf16.mxu0 0
      %889 = vmatpush1.bf16.msra.mxu0 %v851
      %890 = vmatprep.subr.bf16.mxu0 0
      %891 = vmatpush1.bf16.msra.mxu0 %v850
      %892 = vmatprep.subr.bf16.mxu0 0
      %893 = vmatpush1.bf16.msra.mxu0 %v849
      %894 = vmatprep.subr.bf16.mxu0 0
      %895 = vmatpush1.bf16.msra.mxu0 %v848
      %896 = vmatprep.subr.bf16.mxu0 0
      %897 = vmatpush2.bf16.msra.mxu0 0
      %898 = vmatprep.subr.bf16.mxu0 0
      %899 = vmatpush2.bf16.msra.mxu0 0
      %900 = vmatprep.subr.bf16.mxu0 0
      %901 = vmatpush2.bf16.msra.mxu0 0
      %902 = vmatprep.subr.bf16.mxu0 0
      %903 = vmatpush2.bf16.msra.mxu0 0
      %904 = vmatprep.subr.bf16.mxu0 0
      %905 = vmatpush2.bf16.msra.mxu0 0
      %906 = vmatprep.subr.bf16.mxu0 0
      %907 = vmatpush2.bf16.msra.mxu0 0
      %908 = vmatprep.subr.bf16.mxu0 0
      %909 = vmatpush2.bf16.msra.mxu0 0
      %910 = vmatprep.subr.bf16.mxu0 0
      %911 = vmatpush2.bf16.msra.mxu0 0
      %912 = vmatprep.mubr.bf16.mxu0 0
      %913 = vmatmul.mubr.bf16.gmra.mxu0 %v857
      %v914 = vpop.f32.mrf.mxu0
      %v915 = vadd.f32 %v830, %v914
      %v916 = vpop.f32.mrf.mxu0
      %v917 = vpop.f32.mrf.mxu0
      %v918 = vadd.f32 %v830, %v917
      %v919 = vpop.f32.mrf.mxu0
      %920 = vmatprep.mubr.bf16.mxu0 0
      %921 = vmatmul.mubr.bf16.gmra.mxu0 %v860
      %v922 = vpop.f32.mrf.mxu0
      %v923 = vadd.f32 %v830, %v922
      %v924 = vpop.f32.mrf.mxu0
      %v925 = vpop.f32.mrf.mxu0
      %v926 = vadd.f32 %v830, %v925
      %v927 = vpop.f32.mrf.mxu0
      %928 = vmatprep.mubr.bf16.mxu0 0
      %929 = vmatmul.mubr.bf16.gmra.mxu0 %v863
      %v930 = vpop.f32.mrf.mxu0
      %v931 = vadd.f32 %v830, %v930
      %v932 = vpop.f32.mrf.mxu0
      %v933 = vpop.f32.mrf.mxu0
      %v934 = vadd.f32 %v830, %v933
      %v935 = vpop.f32.mrf.mxu0
      %936 = vmatprep.mubr.bf16.mxu0 0
      %937 = vmatmul.mubr.bf16.gmra.mxu0 %v866
      %v938 = vpop.f32.mrf.mxu0
      %v939 = vadd.f32 %v830, %v938
      %v940 = vpop.f32.mrf.mxu0
      %v941 = vpop.f32.mrf.mxu0
      %v942 = vadd.f32 %v830, %v941
      %v943 = vpop.f32.mrf.mxu0
      %944 = vmatprep.mubr.bf16.mxu0 0
      %945 = vmatmul.mubr.bf16.gmra.mxu0 %v869
      %v946 = vpop.f32.mrf.mxu0
      %v947 = vadd.f32 %v830, %v946
      %v948 = vpop.f32.mrf.mxu0
      %v949 = vpop.f32.mrf.mxu0
      %v950 = vadd.f32 %v830, %v949
      %v951 = vpop.f32.mrf.mxu0
      %952 = vmatprep.mubr.bf16.mxu0 0
      %953 = vmatmul.mubr.bf16.gmra.mxu0 %v872
      %v954 = vpop.f32.mrf.mxu0
      %v955 = vadd.f32 %v830, %v954
      %v956 = vpop.f32.mrf.mxu0
      %v957 = vpop.f32.mrf.mxu0
      %v958 = vadd.f32 %v830, %v957
      %v959 = vpop.f32.mrf.mxu0
      %960 = vmatprep.mubr.bf16.mxu0 0
      %961 = vmatmul.mubr.bf16.gmra.mxu0 %v875
      %v962 = vpop.f32.mrf.mxu0
      %v963 = vadd.f32 %v830, %v962
      %v964 = vpop.f32.mrf.mxu0
      %v965 = vpop.f32.mrf.mxu0
      %v966 = vadd.f32 %v830, %v965
      %v967 = vpop.f32.mrf.mxu0
      %968 = vmatprep.mubr.bf16.mxu0 0
      %969 = vmatmul.mubr.bf16.gmra.mxu0 %v878
      %v970 = vpop.f32.mrf.mxu0
      %v971 = vadd.f32 %v830, %v970
      %v972 = vpop.f32.mrf.mxu0
      %v973 = vpop.f32.mrf.mxu0
      %v974 = vadd.f32 %v830, %v973
      %v975 = vpop.f32.mrf.mxu0
      %976 = vdwg.mxu0
      %v977 = vmax.f32 %v915, 0.0
      %v978 = vmax.f32 %v918, 0.0
      %v979 = vmax.f32 %v923, 0.0
      %v980 = vmax.f32 %v926, 0.0
      %v981 = vmax.f32 %v931, 0.0
      %v982 = vmax.f32 %v934, 0.0
      %v983 = vmax.f32 %v939, 0.0
      %v984 = vmax.f32 %v942, 0.0
      %v985 = vmax.f32 %v947, 0.0
      %v986 = vmax.f32 %v950, 0.0
      %v987 = vmax.f32 %v955, 0.0
      %v988 = vmax.f32 %v958, 0.0
      %v989 = vmax.f32 %v963, 0.0
      %v990 = vmax.f32 %v966, 0.0
      %v991 = vmax.f32 %v971, 0.0
      %v992 = vmax.f32 %v974, 0.0
      %v993 = vpack.c.bf16 %v978, %v977
      %v994 = vpack.c.bf16 %v980, %v979
      %v995 = vpack.c.bf16 %v982, %v981
      %v996 = vpack.c.bf16 %v984, %v983
      %v997 = vpack.c.bf16 %v986, %v985
      %v998 = vpack.c.bf16 %v988, %v987
      %v999 = vpack.c.bf16 %v990, %v989
      %v1000 = vpack.c.bf16 %v992, %v991
      %v1001 = vld [vmem:[%s7] sm:$0xf]
      %v1002 = vld [vmem:[%s7 + $0x4] sm:$0xf]
      %v1003 = vld [vmem:[%s7 + $0x8] sm:$0xf]
      %v1004 = vld [vmem:[%s7 + $0xc] sm:$0xf]
      %v1005 = vld [vmem:[%s7 + $0x10] sm:$0xf]
      %v1006 = vld [vmem:[%s7 + $0x14] sm:$0xf]
      %v1007 = vld [vmem:[%s7 + $0x18] sm:$0xf]
      %v1008 = vld [vmem:[%s7 + $0x1c] sm:$0xf]
      %v1009 = vld [vmem:[%s8] sm:$0x1]
      %v1011 = vlaneseq
      %v1012 = vshrl.u32 %v1011, 7
      %v1013 = vsub.s32 0, %v1012
      %v1014 = vrot.slane %v1009, %v1013
      %v1024 = vunpack.c.l.b16 %v1001
      %v1025 = vunpack.c.l.b16 %v1002
      %v1026 = vunpack.c.l.b16 %v1003
      %v1027 = vunpack.c.l.b16 %v1004
      %v1028 = vunpack.c.l.b16 %v1005
      %v1029 = vunpack.c.l.b16 %v1006
      %v1030 = vunpack.c.l.b16 %v1007
      %v1031 = vunpack.c.l.b16 %v1008
      %v1032 = vpack.c.b16 %v1025, %v1024
      %v1033 = vpack.c.b16 %v1027, %v1026
      %v1034 = vpack.c.b16 %v1029, %v1028
      %v1035 = vpack.c.b16 %v1031, %v1030
      %v1041 = vsel %vm671, %v993, 0
      %v1044 = vsel %vm671, %v994, 0
      %v1047 = vsel %vm671, %v995, 0
      %v1050 = vsel %vm671, %v996, 0
      %v1053 = vsel %vm671, %v997, 0
      %v1056 = vsel %vm671, %v998, 0
      %v1059 = vsel %vm671, %v999, 0
      %v1062 = vsel %vm671, %v1000, 0
      %1064 = vmatprep.subr.bf16.mxu0 0
      %1065 = vmatpush1.bf16.msra.mxu0 0
      %1066 = vmatprep.subr.bf16.mxu0 0
      %1067 = vmatpush1.bf16.msra.mxu0 0
      %1068 = vmatprep.subr.bf16.mxu0 0
      %1069 = vmatpush1.bf16.msra.mxu0 0
      %1070 = vmatprep.subr.bf16.mxu0 0
      %1071 = vmatpush1.bf16.msra.mxu0 0
      %1072 = vmatprep.subr.bf16.mxu0 0
      %1073 = vmatpush1.bf16.msra.mxu0 %v1035
      %1074 = vmatprep.subr.bf16.mxu0 0
      %1075 = vmatpush1.bf16.msra.mxu0 %v1034
      %1076 = vmatprep.subr.bf16.mxu0 0
      %1077 = vmatpush1.bf16.msra.mxu0 %v1033
      %1078 = vmatprep.subr.bf16.mxu0 0
      %1079 = vmatpush1.bf16.msra.mxu0 %v1032
      %1080 = vmatprep.subr.bf16.mxu0 0
      %1081 = vmatpush2.bf16.msra.mxu0 0
      %1082 = vmatprep.subr.bf16.mxu0 0
      %1083 = vmatpush2.bf16.msra.mxu0 0
      %1084 = vmatprep.subr.bf16.mxu0 0
      %1085 = vmatpush2.bf16.msra.mxu0 0
      %1086 = vmatprep.subr.bf16.mxu0 0
      %1087 = vmatpush2.bf16.msra.mxu0 0
      %1088 = vmatprep.subr.bf16.mxu0 0
      %1089 = vmatpush2.bf16.msra.mxu0 0
      %1090 = vmatprep.subr.bf16.mxu0 0
      %1091 = vmatpush2.bf16.msra.mxu0 0
      %1092 = vmatprep.subr.bf16.mxu0 0
      %1093 = vmatpush2.bf16.msra.mxu0 0
      %1094 = vmatprep.subr.bf16.mxu0 0
      %1095 = vmatpush2.bf16.msra.mxu0 0
      %1096 = vmatprep.mubr.bf16.mxu0 0
      %1097 = vmatmul.mubr.bf16.gmra.mxu0 %v1041
      %v1098 = vpop.f32.mrf.mxu0
      %v1099 = vadd.f32 %v1014, %v1098
      %v1100 = vpop.f32.mrf.mxu0
      %v1101 = vpop.f32.mrf.mxu0
      %v1102 = vadd.f32 %v1014, %v1101
      %v1103 = vpop.f32.mrf.mxu0
      %1104 = vmatprep.mubr.bf16.mxu0 0
      %1105 = vmatmul.mubr.bf16.gmra.mxu0 %v1044
      %v1106 = vpop.f32.mrf.mxu0
      %v1107 = vadd.f32 %v1014, %v1106
      %v1108 = vpop.f32.mrf.mxu0
      %v1109 = vpop.f32.mrf.mxu0
      %v1110 = vadd.f32 %v1014, %v1109
      %v1111 = vpop.f32.mrf.mxu0
      %1112 = vmatprep.mubr.bf16.mxu0 0
      %1113 = vmatmul.mubr.bf16.gmra.mxu0 %v1047
      %v1114 = vpop.f32.mrf.mxu0
      %v1115 = vadd.f32 %v1014, %v1114
      %v1116 = vpop.f32.mrf.mxu0
      %v1117 = vpop.f32.mrf.mxu0
      %v1118 = vadd.f32 %v1014, %v1117
      %v1119 = vpop.f32.mrf.mxu0
      %1120 = vmatprep.mubr.bf16.mxu0 0
      %1121 = vmatmul.mubr.bf16.gmra.mxu0 %v1050
      %v1122 = vpop.f32.mrf.mxu0
      %v1123 = vadd.f32 %v1014, %v1122
      %v1124 = vpop.f32.mrf.mxu0
      %v1125 = vpop.f32.mrf.mxu0
      %v1126 = vadd.f32 %v1014, %v1125
      %v1127 = vpop.f32.mrf.mxu0
      %1128 = vmatprep.mubr.bf16.mxu0 0
      %1129 = vmatmul.mubr.bf16.gmra.mxu0 %v1053
      %v1130 = vpop.f32.mrf.mxu0
      %v1131 = vadd.f32 %v1014, %v1130
      %v1132 = vpop.f32.mrf.mxu0
      %v1133 = vpop.f32.mrf.mxu0
      %v1134 = vadd.f32 %v1014, %v1133
      %v1135 = vpop.f32.mrf.mxu0
      %1136 = vmatprep.mubr.bf16.mxu0 0
      %1137 = vmatmul.mubr.bf16.gmra.mxu0 %v1056
      %v1138 = vpop.f32.mrf.mxu0
      %v1139 = vadd.f32 %v1014, %v1138
      %v1140 = vpop.f32.mrf.mxu0
      %v1141 = vpop.f32.mrf.mxu0
      %v1142 = vadd.f32 %v1014, %v1141
      %v1143 = vpop.f32.mrf.mxu0
      %1144 = vmatprep.mubr.bf16.mxu0 0
      %1145 = vmatmul.mubr.bf16.gmra.mxu0 %v1059
      %v1146 = vpop.f32.mrf.mxu0
      %v1147 = vadd.f32 %v1014, %v1146
      %v1148 = vpop.f32.mrf.mxu0
      %v1149 = vpop.f32.mrf.mxu0
      %v1150 = vadd.f32 %v1014, %v1149
      %v1151 = vpop.f32.mrf.mxu0
      %1152 = vmatprep.mubr.bf16.mxu0 0
      %1153 = vmatmul.mubr.bf16.gmra.mxu0 %v1062
      %v1154 = vpop.f32.mrf.mxu0
      %v1155 = vadd.f32 %v1014, %v1154
      %v1156 = vpop.f32.mrf.mxu0
      %v1157 = vpop.f32.mrf.mxu0
      %v1158 = vadd.f32 %v1014, %v1157
      %v1159 = vpop.f32.mrf.mxu0
      %1160 = vdwg.mxu0
      %v1161 = vmax.f32 %v1099, 0.0
      %v1162 = vmax.f32 %v1102, 0.0
      %v1163 = vmax.f32 %v1107, 0.0
      %v1164 = vmax.f32 %v1110, 0.0
      %v1165 = vmax.f32 %v1115, 0.0
      %v1166 = vmax.f32 %v1118, 0.0
      %v1167 = vmax.f32 %v1123, 0.0
      %v1168 = vmax.f32 %v1126, 0.0
      %v1169 = vmax.f32 %v1131, 0.0
      %v1170 = vmax.f32 %v1134, 0.0
      %v1171 = vmax.f32 %v1139, 0.0
      %v1172 = vmax.f32 %v1142, 0.0
      %v1173 = vmax.f32 %v1147, 0.0
      %v1174 = vmax.f32 %v1150, 0.0
      %v1175 = vmax.f32 %v1155, 0.0
      %v1176 = vmax.f32 %v1158, 0.0
      %v1177 = vpack.c.bf16 %v1162, %v1161
      %v1178 = vpack.c.bf16 %v1164, %v1163
      %v1179 = vpack.c.bf16 %v1166, %v1165
      %v1180 = vpack.c.bf16 %v1168, %v1167
      %v1181 = vpack.c.bf16 %v1170, %v1169
      %v1182 = vpack.c.bf16 %v1172, %v1171
      %v1183 = vpack.c.bf16 %v1174, %v1173
      %v1184 = vpack.c.bf16 %v1176, %v1175
      %v1185 = vld [vmem:[%s9] sm:$0xf]
      %v1186 = vld [vmem:[%s9 + $0x4] sm:$0xf]
      %v1187 = vld [vmem:[%s9 + $0x8] sm:$0xf]
      %v1188 = vld [vmem:[%s9 + $0xc] sm:$0xf]
      %v1189 = vld [vmem:[%s9 + $0x10] sm:$0xf]
      %v1190 = vld [vmem:[%s9 + $0x14] sm:$0xf]
      %v1191 = vld [vmem:[%s9 + $0x18] sm:$0xf]
      %v1192 = vld [vmem:[%s9 + $0x1c] sm:$0xf]
      %v1193 = vld [vmem:[%s10] sm:$0x1]
      %v1195 = vlaneseq
      %v1196 = vshrl.u32 %v1195, 7
      %v1197 = vsub.s32 0, %v1196
      %v1198 = vrot.slane %v1193, %v1197
      %v1208 = vunpack.c.l.b16 %v1185
      %v1209 = vunpack.c.l.b16 %v1186
      %v1210 = vunpack.c.l.b16 %v1187
      %v1211 = vunpack.c.l.b16 %v1188
      %v1212 = vunpack.c.l.b16 %v1189
      %v1213 = vunpack.c.l.b16 %v1190
      %v1214 = vunpack.c.l.b16 %v1191
      %v1215 = vunpack.c.l.b16 %v1192
      %v1216 = vpack.c.b16 %v1209, %v1208
      %v1217 = vpack.c.b16 %v1211, %v1210
      %v1218 = vpack.c.b16 %v1213, %v1212
      %v1219 = vpack.c.b16 %v1215, %v1214
      %v1225 = vsel %vm671, %v1177, 0
      %v1228 = vsel %vm671, %v1178, 0
      %v1231 = vsel %vm671, %v1179, 0
      %v1234 = vsel %vm671, %v1180, 0
      %v1237 = vsel %vm671, %v1181, 0
      %v1240 = vsel %vm671, %v1182, 0
      %v1243 = vsel %vm671, %v1183, 0
      %v1246 = vsel %vm671, %v1184, 0
      %1248 = vmatprep.subr.bf16.mxu0 0
      %1249 = vmatpush1.bf16.msra.mxu0 0
      %1250 = vmatprep.subr.bf16.mxu0 0
      %1251 = vmatpush1.bf16.msra.mxu0 0
      %1252 = vmatprep.subr.bf16.mxu0 0
      %1253 = vmatpush1.bf16.msra.mxu0 0
      %1254 = vmatprep.subr.bf16.mxu0 0
      %1255 = vmatpush1.bf16.msra.mxu0 0
      %1256 = vmatprep.subr.bf16.mxu0 0
      %1257 = vmatpush1.bf16.msra.mxu0 %v1219
      %1258 = vmatprep.subr.bf16.mxu0 0
      %1259 = vmatpush1.bf16.msra.mxu0 %v1218
      %1260 = vmatprep.subr.bf16.mxu0 0
      %1261 = vmatpush1.bf16.msra.mxu0 %v1217
      %1262 = vmatprep.subr.bf16.mxu0 0
      %1263 = vmatpush1.bf16.msra.mxu0 %v1216
      %1264 = vmatprep.subr.bf16.mxu0 0
      %1265 = vmatpush2.bf16.msra.mxu0 0
      %1266 = vmatprep.subr.bf16.mxu0 0
      %1267 = vmatpush2.bf16.msra.mxu0 0
      %1268 = vmatprep.subr.bf16.mxu0 0
      %1269 = vmatpush2.bf16.msra.mxu0 0
      %1270 = vmatprep.subr.bf16.mxu0 0
      %1271 = vmatpush2.bf16.msra.mxu0 0
      %1272 = vmatprep.subr.bf16.mxu0 0
      %1273 = vmatpush2.bf16.msra.mxu0 0
      %1274 = vmatprep.subr.bf16.mxu0 0
      %1275 = vmatpush2.bf16.msra.mxu0 0
      %1276 = vmatprep.subr.bf16.mxu0 0
      %1277 = vmatpush2.bf16.msra.mxu0 0
      %1278 = vmatprep.subr.bf16.mxu0 0
      %1279 = vmatpush2.bf16.msra.mxu0 0
      %1280 = vmatprep.mubr.bf16.mxu0 0
      %1281 = vmatmul.mubr.bf16.gmra.mxu0 %v1225
      %v1282 = vpop.f32.mrf.mxu0
      %v1283 = vadd.f32 %v1198, %v1282
      %v1284 = vpop.f32.mrf.mxu0
      %v1285 = vpop.f32.mrf.mxu0
      %v1286 = vadd.f32 %v1198, %v1285
      %v1287 = vpop.f32.mrf.mxu0
      %1288 = vmatprep.mubr.bf16.mxu0 0
      %1289 = vmatmul.mubr.bf16.gmra.mxu0 %v1228
      %v1290 = vpop.f32.mrf.mxu0
      %v1291 = vadd.f32 %v1198, %v1290
      %v1292 = vpop.f32.mrf.mxu0
      %v1293 = vpop.f32.mrf.mxu0
      %v1294 = vadd.f32 %v1198, %v1293
      %v1295 = vpop.f32.mrf.mxu0
      %1296 = vmatprep.mubr.bf16.mxu0 0
      %1297 = vmatmul.mubr.bf16.gmra.mxu0 %v1231
      %v1298 = vpop.f32.mrf.mxu0
      %v1299 = vadd.f32 %v1198, %v1298
      %v1300 = vpop.f32.mrf.mxu0
      %v1301 = vpop.f32.mrf.mxu0
      %v1302 = vadd.f32 %v1198, %v1301
      %v1303 = vpop.f32.mrf.mxu0
      %1304 = vmatprep.mubr.bf16.mxu0 0
      %1305 = vmatmul.mubr.bf16.gmra.mxu0 %v1234
      %v1306 = vpop.f32.mrf.mxu0
      %v1307 = vadd.f32 %v1198, %v1306
      %v1308 = vpop.f32.mrf.mxu0
      %v1309 = vpop.f32.mrf.mxu0
      %v1310 = vadd.f32 %v1198, %v1309
      %v1311 = vpop.f32.mrf.mxu0
      %1312 = vmatprep.mubr.bf16.mxu0 0
      %1313 = vmatmul.mubr.bf16.gmra.mxu0 %v1237
      %v1314 = vpop.f32.mrf.mxu0
      %v1315 = vadd.f32 %v1198, %v1314
      %v1316 = vpop.f32.mrf.mxu0
      %v1317 = vpop.f32.mrf.mxu0
      %v1318 = vadd.f32 %v1198, %v1317
      %v1319 = vpop.f32.mrf.mxu0
      %1320 = vmatprep.mubr.bf16.mxu0 0
      %1321 = vmatmul.mubr.bf16.gmra.mxu0 %v1240
      %v1322 = vpop.f32.mrf.mxu0
      %v1323 = vadd.f32 %v1198, %v1322
      %v1324 = vpop.f32.mrf.mxu0
      %v1325 = vpop.f32.mrf.mxu0
      %v1326 = vadd.f32 %v1198, %v1325
      %v1327 = vpop.f32.mrf.mxu0
      %1328 = vmatprep.mubr.bf16.mxu0 0
      %1329 = vmatmul.mubr.bf16.gmra.mxu0 %v1243
      %v1330 = vpop.f32.mrf.mxu0
      %v1331 = vadd.f32 %v1198, %v1330
      %v1332 = vpop.f32.mrf.mxu0
      %v1333 = vpop.f32.mrf.mxu0
      %v1334 = vadd.f32 %v1198, %v1333
      %v1335 = vpop.f32.mrf.mxu0
      %1336 = vmatprep.mubr.bf16.mxu0 0
      %1337 = vmatmul.mubr.bf16.gmra.mxu0 %v1246
      %v1338 = vpop.f32.mrf.mxu0
      %v1339 = vadd.f32 %v1198, %v1338
      %v1340 = vpop.f32.mrf.mxu0
      %v1341 = vpop.f32.mrf.mxu0
      %v1342 = vadd.f32 %v1198, %v1341
      %v1343 = vpop.f32.mrf.mxu0
      %1344 = vdwg.mxu0
      %v1345 = vmax.f32 %v1283, 0.0
      %v1346 = vmax.f32 %v1286, 0.0
      %v1347 = vmax.f32 %v1291, 0.0
      %v1348 = vmax.f32 %v1294, 0.0
      %v1349 = vmax.f32 %v1299, 0.0
      %v1350 = vmax.f32 %v1302, 0.0
      %v1351 = vmax.f32 %v1307, 0.0
      %v1352 = vmax.f32 %v1310, 0.0
      %v1353 = vmax.f32 %v1315, 0.0
      %v1354 = vmax.f32 %v1318, 0.0
      %v1355 = vmax.f32 %v1323, 0.0
      %v1356 = vmax.f32 %v1326, 0.0
      %v1357 = vmax.f32 %v1331, 0.0
      %v1358 = vmax.f32 %v1334, 0.0
      %v1359 = vmax.f32 %v1339, 0.0
      %v1360 = vmax.f32 %v1342, 0.0
      %v1361 = vpack.c.bf16 %v1346, %v1345
      %v1362 = vpack.c.bf16 %v1348, %v1347
      %v1363 = vpack.c.bf16 %v1350, %v1349
      %v1364 = vpack.c.bf16 %v1352, %v1351
      %v1365 = vpack.c.bf16 %v1354, %v1353
      %v1366 = vpack.c.bf16 %v1356, %v1355
      %v1367 = vpack.c.bf16 %v1358, %v1357
      %v1368 = vpack.c.bf16 %v1360, %v1359
      %v1369 = vld [vmem:[%s11] sm:$0xf]
      %v1370 = vld [vmem:[%s11 + $0x4] sm:$0xf]
      %v1371 = vld [vmem:[%s11 + $0x8] sm:$0xf]
      %v1372 = vld [vmem:[%s11 + $0xc] sm:$0xf]
      %v1373 = vld [vmem:[%s11 + $0x10] sm:$0xf]
      %v1374 = vld [vmem:[%s11 + $0x14] sm:$0xf]
      %v1375 = vld [vmem:[%s11 + $0x18] sm:$0xf]
      %v1376 = vld [vmem:[%s11 + $0x1c] sm:$0xf]
      %v1377 = vld [vmem:[#allocation2] sm:$0x1]
      %v1379 = vlaneseq
      %v1380 = vshrl.u32 %v1379, 7
      %v1381 = vsub.s32 0, %v1380
      %v1382 = vrot.slane %v1377, %v1381
      %v1392 = vunpack.c.l.b16 %v1369
      %v1393 = vunpack.c.l.b16 %v1370
      %v1394 = vunpack.c.l.b16 %v1371
      %v1395 = vunpack.c.l.b16 %v1372
      %v1396 = vunpack.c.l.b16 %v1373
      %v1397 = vunpack.c.l.b16 %v1374
      %v1398 = vunpack.c.l.b16 %v1375
      %v1399 = vunpack.c.l.b16 %v1376
      %v1400 = vpack.c.b16 %v1393, %v1392
      %v1401 = vpack.c.b16 %v1395, %v1394
      %v1402 = vpack.c.b16 %v1397, %v1396
      %v1403 = vpack.c.b16 %v1399, %v1398
      %v1409 = vsel %vm671, %v1361, 0
      %v1412 = vsel %vm671, %v1362, 0
      %v1415 = vsel %vm671, %v1363, 0
      %v1418 = vsel %vm671, %v1364, 0
      %v1421 = vsel %vm671, %v1365, 0
      %v1424 = vsel %vm671, %v1366, 0
      %v1427 = vsel %vm671, %v1367, 0
      %v1430 = vsel %vm671, %v1368, 0
      %1432 = vmatprep.subr.bf16.mxu0 0
      %1433 = vmatpush1.bf16.msra.mxu0 0
      %1434 = vmatprep.subr.bf16.mxu0 0
      %1435 = vmatpush1.bf16.msra.mxu0 0
      %1436 = vmatprep.subr.bf16.mxu0 0
      %1437 = vmatpush1.bf16.msra.mxu0 0
      %1438 = vmatprep.subr.bf16.mxu0 0
      %1439 = vmatpush1.bf16.msra.mxu0 0
      %1440 = vmatprep.subr.bf16.mxu0 0
      %1441 = vmatpush1.bf16.msra.mxu0 %v1403
      %1442 = vmatprep.subr.bf16.mxu0 0
      %1443 = vmatpush1.bf16.msra.mxu0 %v1402
      %1444 = vmatprep.subr.bf16.mxu0 0
      %1445 = vmatpush1.bf16.msra.mxu0 %v1401
      %1446 = vmatprep.subr.bf16.mxu0 0
      %1447 = vmatpush1.bf16.msra.mxu0 %v1400
      %1448 = vmatprep.subr.bf16.mxu0 0
      %1449 = vmatpush2.bf16.msra.mxu0 0
      %1450 = vmatprep.subr.bf16.mxu0 0
      %1451 = vmatpush2.bf16.msra.mxu0 0
      %1452 = vmatprep.subr.bf16.mxu0 0
      %1453 = vmatpush2.bf16.msra.mxu0 0
      %1454 = vmatprep.subr.bf16.mxu0 0
      %1455 = vmatpush2.bf16.msra.mxu0 0
      %1456 = vmatprep.subr.bf16.mxu0 0
      %1457 = vmatpush2.bf16.msra.mxu0 0
      %1458 = vmatprep.subr.bf16.mxu0 0
      %1459 = vmatpush2.bf16.msra.mxu0 0
      %1460 = vmatprep.subr.bf16.mxu0 0
      %1461 = vmatpush2.bf16.msra.mxu0 0
      %1462 = vmatprep.subr.bf16.mxu0 0
      %1463 = vmatpush2.bf16.msra.mxu0 0
      %1464 = vmatprep.mubr.bf16.mxu0 0
      %1465 = vmatmul.mubr.bf16.gmra.mxu0 %v1409
      %v1466 = vpop.f32.mrf.mxu0
      %v1467 = vadd.f32 %v1382, %v1466
      %v1468 = vpop.f32.mrf.mxu0
      %v1469 = vpop.f32.mrf.mxu0
      %v1470 = vadd.f32 %v1382, %v1469
      %v1471 = vpop.f32.mrf.mxu0
      %1472 = vmatprep.mubr.bf16.mxu0 0
      %1473 = vmatmul.mubr.bf16.gmra.mxu0 %v1412
      %v1474 = vpop.f32.mrf.mxu0
      %v1475 = vadd.f32 %v1382, %v1474
      %v1476 = vpop.f32.mrf.mxu0
      %v1477 = vpop.f32.mrf.mxu0
      %v1478 = vadd.f32 %v1382, %v1477
      %v1479 = vpop.f32.mrf.mxu0
      %1480 = vmatprep.mubr.bf16.mxu0 0
      %1481 = vmatmul.mubr.bf16.gmra.mxu0 %v1415
      %v1482 = vpop.f32.mrf.mxu0
      %v1483 = vadd.f32 %v1382, %v1482
      %v1484 = vpop.f32.mrf.mxu0
      %v1485 = vpop.f32.mrf.mxu0
      %v1486 = vadd.f32 %v1382, %v1485
      %v1487 = vpop.f32.mrf.mxu0
      %1488 = vmatprep.mubr.bf16.mxu0 0
      %1489 = vmatmul.mubr.bf16.gmra.mxu0 %v1418
      %v1490 = vpop.f32.mrf.mxu0
      %v1491 = vadd.f32 %v1382, %v1490
      %v1492 = vpop.f32.mrf.mxu0
      %v1493 = vpop.f32.mrf.mxu0
      %v1494 = vadd.f32 %v1382, %v1493
      %v1495 = vpop.f32.mrf.mxu0
      %1496 = vmatprep.mubr.bf16.mxu0 0
      %1497 = vmatmul.mubr.bf16.gmra.mxu0 %v1421
      %v1498 = vpop.f32.mrf.mxu0
      %v1499 = vadd.f32 %v1382, %v1498
      %v1500 = vpop.f32.mrf.mxu0
      %v1501 = vpop.f32.mrf.mxu0
      %v1502 = vadd.f32 %v1382, %v1501
      %v1503 = vpop.f32.mrf.mxu0
      %1504 = vmatprep.mubr.bf16.mxu0 0
      %1505 = vmatmul.mubr.bf16.gmra.mxu0 %v1424
      %v1506 = vpop.f32.mrf.mxu0
      %v1507 = vadd.f32 %v1382, %v1506
      %v1508 = vpop.f32.mrf.mxu0
      %v1509 = vpop.f32.mrf.mxu0
      %v1510 = vadd.f32 %v1382, %v1509
      %v1511 = vpop.f32.mrf.mxu0
      %1512 = vmatprep.mubr.bf16.mxu0 0
      %1513 = vmatmul.mubr.bf16.gmra.mxu0 %v1427
      %v1514 = vpop.f32.mrf.mxu0
      %v1515 = vadd.f32 %v1382, %v1514
      %v1516 = vpop.f32.mrf.mxu0
      %v1517 = vpop.f32.mrf.mxu0
      %v1518 = vadd.f32 %v1382, %v1517
      %v1519 = vpop.f32.mrf.mxu0
      %1520 = vmatprep.mubr.bf16.mxu0 0
      %1521 = vmatmul.mubr.bf16.gmra.mxu0 %v1430
      %v1522 = vpop.f32.mrf.mxu0
      %v1523 = vadd.f32 %v1382, %v1522
      %v1524 = vpop.f32.mrf.mxu0
      %v1525 = vpop.f32.mrf.mxu0
      %v1526 = vadd.f32 %v1382, %v1525
      %v1527 = vpop.f32.mrf.mxu0
      %1528 = vdwg.mxu0
      %vm1529 = vcmask 7168
      %1530 = vst.msk [vmem:[%s444] sm:$0xff] %vm1529, %v1467
      %1531 = vst.msk [vmem:[%s444 + $0x8] sm:$0xff] %vm1529, %v1470
      %1532 = vst.msk [vmem:[%s444 + $0x10] sm:$0xff] %vm1529, %v1475
      %1533 = vst.msk [vmem:[%s444 + $0x18] sm:$0xff] %vm1529, %v1478
      %1534 = vst.msk [vmem:[%s444 + $0x20] sm:$0xff] %vm1529, %v1483
      %1535 = vst.msk [vmem:[%s444 + $0x28] sm:$0xff] %vm1529, %v1486
      %1536 = vst.msk [vmem:[%s444 + $0x30] sm:$0xff] %vm1529, %v1491
      %1537 = vst.msk [vmem:[%s444 + $0x38] sm:$0xff] %vm1529, %v1494
      %1538 = vst.msk [vmem:[%s444 + $0x40] sm:$0xff] %vm1529, %v1499
      %1539 = vst.msk [vmem:[%s444 + $0x48] sm:$0xff] %vm1529, %v1502
      %1540 = vst.msk [vmem:[%s444 + $0x50] sm:$0xff] %vm1529, %v1507
      %1541 = vst.msk [vmem:[%s444 + $0x58] sm:$0xff] %vm1529, %v1510
      %1542 = vst.msk [vmem:[%s444 + $0x60] sm:$0xff] %vm1529, %v1515
      %1543 = vst.msk [vmem:[%s444 + $0x68] sm:$0xff] %vm1529, %v1518
      %1544 = vst.msk [vmem:[%s444 + $0x70] sm:$0xff] %vm1529, %v1523
      %1545 = vst.msk [vmem:[%s444 + $0x78] sm:$0xff] %vm1529, %v1526
      %s1546 = smul.u32 16, %s26
      %p1547 = scmp.lt.s32.totalorder %s1546, 31
      %s1548 = scalar_select %p1547, %s1546, 31
      %s1549 = smul.addr %s1548, 8
      %s1550 = scalar_lea.vmem %s13, %s1549
      // Predicated region
      $region73: #{tpu_custom_call.1} parent=71 // pred_check
        %p1551 = pneg %p322
      $region74: #{tpu_custom_call.1} parent=71 // pred_check_branch
        %1553 = sbr.rel (%p1551) target = $region76
      $region75: #{tpu_custom_call.1} parent=71 // pred_region
        %s1554 = smul.u32 16, %s26
      $region76: #{tpu_custom_call.1} parent=71 // pred_fallthru
        _
    $region72: #{tpu_custom_call.1} parent=5 // pred_fallthru
      _
    %p1555 = scmp.le.s32.totalorder 2, %s21
    // Predicated region
    $region77: #{tpu_custom_call.1} parent=5 // pred_check
      %p1556 = pneg %p1555
    $region78: #{tpu_custom_call.1} parent=5 // pred_check_branch
      %1558 = sbr.rel (%p1556) target = $region80
    $region79: #{tpu_custom_call.1} parent=5 // pred_region
      %s1559 = ssub.s32 %s21, 2
      // Predicated region
      $region81: #{tpu_custom_call.1} parent=79 // pred_check
        %p1560 = pneg %p328
      $region82: #{tpu_custom_call.1} parent=79 // pred_check_branch
        %1562 = sbr.rel (%p1560) target = $region84
      $region83: #{tpu_custom_call.1} parent=79 // pred_region
        %s1563 = smul.u32 16, %s27
        %p1564 = scmp.lt.s32.totalorder %s1563, 31
        %s1565 = scalar_select %p1564, %s1563, 31
        %s1566 = smul.addr %s1565, 8
        %s1567 = scalar_lea.vmem %s13, %s1566
      $region84: #{tpu_custom_call.1} parent=79 // pred_fallthru
        _
    $region80: #{tpu_custom_call.1} parent=5 // pred_fallthru
      _
  $region6: #{tpu_custom_call.1} parent=0 // loop_footer
    %s25 = sadd.s32 1, %s21
  $region7: #{tpu_custom_call.1} parent=0 // loop_footer_branch
    %20 = sbr.rel target = $region3
  $region8: #{tpu_custom_call.1} parent=0 // loop_exit
    _

</llo_original>
